<compile_context>
chip_gen: v7x
topology: tpu7x:2x2x1
jax: 0.10.0
libtpu: 0.0.40
codegen_flags: <defaults>
</compile_context>

<pallas_src>
import jax
import jax.numpy as jnp
from jax import lax
from jax.experimental import pallas as pl
from jax.experimental.pallas import tpu as pltpu


def _round_up(x, m):
    return ((x + m - 1) // m) * m


# --------------------------- fused BasicBlock kernel -------------------------

def _make_block_kernel(Cin, Cout, H, W, stride, equal, Cp1, Cp2, PAD1, PAD2):
    K = 3
    Ho = (H + 2 - K) // stride + 1
    Wo = (W + 2 - K) // stride + 1
    HW, HW1 = H * W, Ho * Wo
    has_sc = not equal
    has_S = stride > 1

    def build_patches(src_ref, patch_ref, Wc, PADc, Cp, HWc):
        """im2col for a 3x3 / pad-1 / stride-1 conv on a (Cp, PADc+HWc+PADc)
        flat zero-padded buffer.  Only two lane masks are needed (taps with
        dw=-1 / dw=+1); vertical shifts land in the zero pads (PADc >= Wc+1)."""
        ww = lax.broadcasted_iota(jnp.int32, (1, HWc), 1) % Wc
        left_ok = ww > 0             # keep unless at the left image edge
        right_ok = ww < (Wc - 1)     # keep unless at the right image edge
        for kh in range(K):
            for kw in range(K):
                dh, dw = kh - 1, kw - 1
                s = dh * Wc + dw
                shifted = src_ref[:, PADc + s: PADc + s + HWc]      # (Cp, HWc)
                if dw < 0:
                    shifted = jnp.where(left_ok, shifted, jnp.zeros_like(shifted))
                elif dw > 0:
                    shifted = jnp.where(right_ok, shifted, jnp.zeros_like(shifted))
                tap = kh * K + kw
                patch_ref[tap * Cp:(tap + 1) * Cp, 0:HWc] = shifted

    def kernel(*refs):
        x_ref, s1_ref, b1_ref, b2_ref, w1_ref, w2_ref = refs[:6]
        i = 6
        wsc_ref = None
        S_ref = None
        if has_sc:
            wsc_ref = refs[i]; i += 1
        if has_S:
            S_ref = refs[i]; i += 1
        o_ref, a1p, a2p, patch = refs[i:i + 4]

        # ---- zero only the pad regions of the staging buffers ---------------
        zp1 = jnp.zeros((Cp1, PAD1), dtype=a1p.dtype)
        a1p[:, 0:PAD1] = zp1
        a1p[:, PAD1 + HW:PAD1 + HW + PAD1] = zp1
        if Cp1 > Cin:
            a1p[Cin:Cp1, PAD1:PAD1 + HW] = jnp.zeros((Cp1 - Cin, HW), dtype=a1p.dtype)
        zp2 = jnp.zeros((Cp2, PAD2), dtype=a2p.dtype)
        a2p[:, 0:PAD2] = zp2
        a2p[:, PAD2 + HW1:PAD2 + HW1 + PAD2] = zp2
        if Cp2 > Cout:
            a2p[Cout:Cp2, PAD2:PAD2 + HW1] = jnp.zeros((Cp2 - Cout, HW1), dtype=a2p.dtype)

        # ---- bn1 + relu -> bf16 staging buffer -------------------------------
        a1 = jnp.maximum(x_ref[0].astype(jnp.float32) * s1_ref[...] + b1_ref[...], 0.0)
        a1p[0:Cin, PAD1:PAD1 + HW] = a1.astype(a1p.dtype)

        # ---- conv1 (bn2 scale pre-folded into w1): one bf16 MXU contraction --
        build_patches(a1p, patch, W, PAD1, Cp1, HW)
        h1 = jnp.dot(w1_ref[...], patch[0:9 * Cp1, 0:HW],
                     preferred_element_type=jnp.float32)            # (Cout, HW)
        if has_S:
            # TODO(synk): build the conv1/shortcut patches directly at the
            # Ho*Wo strided positions to remove the stride^2 extra conv flops.
            h1 = jnp.dot(h1.astype(jnp.bfloat16), S_ref[...],
                         preferred_element_type=jnp.float32)        # (Cout, HW1)

        # ---- bn2 shift + relu -> bf16 staging buffer -------------------------
        a2 = jnp.maximum(h1 + b2_ref[...], 0.0)
        a2p[0:Cout, PAD2:PAD2 + HW1] = a2.astype(a2p.dtype)

        # ---- shortcut ---------------------------------------------------------
        if equal:
            res = x_ref[0].astype(jnp.float32)        # re-read; stride == 1 here
        else:
            a1v = a1p[0:Cp1, PAD1:PAD1 + HW]           # (Cp1, HW) bf16
            if has_S:
                a1v = jnp.dot(a1v, S_ref[...],
                              preferred_element_type=jnp.float32).astype(jnp.bfloat16)
            res = jnp.dot(wsc_ref[...], a1v,
                          preferred_element_type=jnp.float32)        # (Cout, HW1)

        # ---- conv2 + residual, lane-dense store (shared patch scratch) --------
        build_patches(a2p, patch, Wo, PAD2, Cp2, HW1)
        out = jnp.dot(w2_ref[...], patch[0:9 * Cp2, 0:HW1],
                      preferred_element_type=jnp.float32)            # (Cout, HW1)
        o_ref[0] = (out + res).astype(o_ref.dtype)

    return kernel


# --------------------------- parameter massaging -----------------------------

def _fold_bn(gamma, beta, mean, var, eps=1e-5):
    scale = gamma / jnp.sqrt(var + eps)
    shift = beta - mean * scale
    return scale, shift


def _prep_conv3x3(w_hwio, cpad, out_scale=None):
    K, _, cin, cout = w_hwio.shape
    w = jnp.transpose(w_hwio, (3, 0, 1, 2)).astype(jnp.float32)  # (Cout,K,K,Cin)
    if out_scale is not None:
        w = w * out_scale.reshape(cout, 1, 1, 1)                 # fold bn2 scale
    if cpad != cin:
        w = jnp.pad(w, ((0, 0), (0, 0), (0, 0), (0, cpad - cin)))
    return w.reshape(cout, K * K * cpad).astype(jnp.bfloat16)


def _prep_conv1x1(w_hwio, cpad):
    _, _, cin, cout = w_hwio.shape
    w = w_hwio[0, 0].T.astype(jnp.float32)                       # (Cout, Cin)
    if cpad != cin:
        w = jnp.pad(w, ((0, 0), (0, cpad - cin)))
    return w.astype(jnp.bfloat16)


def _make_subsample_onehot(H, W, Ho, Wo, stride):
    """(H*W, Ho*Wo) bf16 one-hot selecting the strided spatial positions."""
    r = jnp.arange(H * W, dtype=jnp.int32)[:, None]
    q = jnp.arange(Ho * Wo, dtype=jnp.int32)[None, :]
    tgt = (q // Wo) * (stride * W) + (q % Wo) * stride
    return (r == tgt).astype(jnp.bfloat16)


# --------------------------- fused layer wrapper -----------------------------

def basic_block_fused(x_flat, layer, H, W):
    """One fused WideResNet BasicBlock.  x_flat: (N, Cin, H*W) -> (N, Cout, Ho*Wo)."""
    p, stride, equal = layer["params"], layer["stride"], layer["equal"]
    N, Cin, HW = x_flat.shape
    Cout = p["conv1_w"].shape[3]
    Ho = (H + 2 - 3) // stride + 1
    Wo = (W + 2 - 3) // stride + 1
    HW1 = Ho * Wo
    Cp1 = _round_up(Cin, 8)
    Cp2 = _round_up(Cout, 8)
    PAD1 = _round_up(W + 1, 128)
    PAD2 = _round_up(Wo + 1, 128)
    Cpmax = max(Cp1, Cp2)
    HWmax = max(HW, HW1)

    s1, b1 = _fold_bn(p["bn1_gamma"], p["bn1_beta"], p["bn1_mean"], p["bn1_var"])
    s2, b2 = _fold_bn(p["bn2_gamma"], p["bn2_beta"], p["bn2_mean"], p["bn2_var"])
    s1 = s1.reshape(Cin, 1).astype(jnp.float32)
    b1 = b1.reshape(Cin, 1).astype(jnp.float32)
    b2 = b2.reshape(Cout, 1).astype(jnp.float32)
    w1 = _prep_conv3x3(p["conv1_w"], Cp1, out_scale=s2.astype(jnp.float32))
    w2 = _prep_conv3x3(p["conv2_w"], Cp2)

    args = [x_flat, s1, b1, b2, w1, w2]
    in_specs = [
        pl.BlockSpec((1, Cin, HW), lambda n: (n, 0, 0)),
        pl.BlockSpec((Cin, 1), lambda n: (0, 0)),
        pl.BlockSpec((Cin, 1), lambda n: (0, 0)),
        pl.BlockSpec((Cout, 1), lambda n: (0, 0)),
        pl.BlockSpec((Cout, 9 * Cp1), lambda n: (0, 0)),
        pl.BlockSpec((Cout, 9 * Cp2), lambda n: (0, 0)),
    ]
    if not equal:
        args.append(_prep_conv1x1(p["shortcut_w"], Cp1))
        in_specs.append(pl.BlockSpec((Cout, Cp1), lambda n: (0, 0)))
    if stride > 1:
        args.append(_make_subsample_onehot(H, W, Ho, Wo, stride))
        in_specs.append(pl.BlockSpec((HW, HW1), lambda n: (0, 0)))

    kernel = _make_block_kernel(Cin, Cout, H, W, stride, equal,
                                Cp1, Cp2, PAD1, PAD2)

    scratch_shapes = [
        pltpu.VMEM((Cp1, HW + 2 * PAD1), jnp.bfloat16),   # padded relu(bn1(x))
        pltpu.VMEM((Cp2, HW1 + 2 * PAD2), jnp.bfloat16),  # padded relu(bn2(.))
        pltpu.VMEM((9 * Cpmax, HWmax), jnp.bfloat16),     # shared im2col patch
    ]

    # explicit VMEM budget: double-buffered blocks + scratch + headroom
    def nbytes(shape, itemsize):
        n = 1
        for d in shape:
            n *= d
        return n * itemsize

    block_bytes = (nbytes((1, Cin, HW), 4) + nbytes((1, Cout, HW1), 4)
                   + 2 * nbytes((Cin, 1), 4) + nbytes((Cout, 1), 4)
                   + nbytes((Cout, 9 * Cp1), 2) + nbytes((Cout, 9 * Cp2), 2))
    if not equal:
        block_bytes += nbytes((Cout, Cp1), 2)
    if stride > 1:
        block_bytes += nbytes((HW, HW1), 2)
    scratch_bytes = (nbytes((Cp1, HW + 2 * PAD1), 2)
                     + nbytes((Cp2, HW1 + 2 * PAD2), 2)
                     + nbytes((9 * Cpmax, HWmax), 2))
    vmem_limit = min(64 << 20, max(16 << 20,
                                   2 * block_bytes + scratch_bytes + (4 << 20)))

    out = pl.pallas_call(
        kernel,
        out_shape=jax.ShapeDtypeStruct((N, Cout, HW1), x_flat.dtype),
        grid=(N,),
        in_specs=in_specs,
        out_specs=pl.BlockSpec((1, Cout, HW1), lambda n: (n, 0, 0)),
        scratch_shapes=scratch_shapes,
        compiler_params=pltpu.CompilerParams(
            dimension_semantics=("parallel",),
            vmem_limit_bytes=int(vmem_limit)),
    )(*args)
    return out, Ho, Wo


def network_block_forward(x_nchw, layers):
    """NCHW in, NCHW out (matches the PyTorch module interface)."""
    N, C, H, W = x_nchw.shape
    x = x_nchw.reshape(N, C, H * W)
    for layer in layers:
        x, H, W = basic_block_fused(x, layer, H, W)
    return x.reshape(N, x.shape[1], H, W)


# --------------------------- parameters --------------------------------------

def init_network_block_params(key, nb_layers, in_planes, out_planes, stride):
    layers = []
    for i in range(nb_layers):
        cin = in_planes if i == 0 else out_planes       # i == 0 and in_planes or out_planes
        s = stride if i == 0 else 1                     # i == 0 and stride or 1
        key, *ks = jax.random.split(key, 12)
        p = {
            "bn1_gamma": jax.random.uniform(ks[0], (cin,), minval=0.8, maxval=1.2),
            "bn1_beta":  0.1 * jax.random.normal(ks[1], (cin,)),
            "bn1_mean":  0.1 * jax.random.normal(ks[2], (cin,)),
            "bn1_var":   jax.random.uniform(ks[3], (cin,), minval=0.5, maxval=1.5),
            "conv1_w":   0.1 * jax.random.normal(ks[4], (3, 3, cin, out_planes)),
            "bn2_gamma": jax.random.uniform(ks[5], (out_planes,), minval=0.8, maxval=1.2),
            "bn2_beta":  0.1 * jax.random.normal(ks[6], (out_planes,)),
            "bn2_mean":  0.1 * jax.random.normal(ks[7], (out_planes,)),
            "bn2_var":   jax.random.uniform(ks[8], (out_planes,), minval=0.5, maxval=1.5),
            "conv2_w":   0.1 * jax.random.normal(ks[9], (3, 3, out_planes, out_planes)),
        }
        equal = (cin == out_planes and s == 1)
        if not equal:
            p["shortcut_w"] = 0.1 * jax.random.normal(ks[10], (1, 1, cin, out_planes))
        layers.append({"params": p, "stride": s, "equal": equal})
    return layers


# --------------------------- pure-JAX reference ------------------------------

def _conv_ref(x, w, stride, padding):
    return jax.lax.conv_general_dilated(
        x, w, window_strides=(stride, stride),
        padding=((padding, padding), (padding, padding)),
        dimension_numbers=("NHWC", "HWIO", "NHWC"),
        precision=jax.lax.Precision.HIGHEST)


def network_block_ref(x_nchw, layers):
    x = jnp.transpose(x_nchw, (0, 2, 3, 1))
    for layer in layers:
        p, s, equal = layer["params"], layer["stride"], layer["equal"]
        s1, b1 = _fold_bn(p["bn1_gamma"], p["bn1_beta"], p["bn1_mean"], p["bn1_var"])
        s2, b2 = _fold_bn(p["bn2_gamma"], p["bn2_beta"], p["bn2_mean"], p["bn2_var"])
        a1 = jnp.maximum(x * s1 + b1, 0.0)
        out = _conv_ref(a1, p["conv1_w"], s, 1)
        a2 = jnp.maximum(out * s2 + b2, 0.0)
        res = x if equal else _conv_ref(a1, p["shortcut_w"], s, 0)
        x = _conv_ref(a2, p["conv2_w"], 1, 1) + res
    return jnp.transpose(x, (0, 3, 1, 2))


# --------------------------- main ---------------------------------------------

if __name__ == "__main__":
    key = jax.random.PRNGKey(0)
    kx, kp, kp2 = jax.random.split(key, 3)

    # ---- Test 1: NetworkBlock(nb_layers=2, in_planes=4, out_planes=8, stride=1)
    nb_layers, in_planes, out_planes, stride = 2, 4, 8, 1
    x = jax.random.normal(kx, (2, in_planes, 16, 16), dtype=jnp.float32)   # NCHW
    layers = init_network_block_params(kp, nb_layers, in_planes, out_planes, stride)

    fwd = jax.jit(lambda xx: network_block_forward(xx, layers))
    y = jax.block_until_ready(fwd(x))
    assert y.shape == (2, out_planes, 16, 16), y.shape

    y_ref = jax.block_until_ready(network_block_ref(x, layers))
    max_err = float(jnp.max(jnp.abs(y - y_ref)))
    assert max_err < 5e-2, f"stride=1: max abs err vs reference: {max_err}"

    # ---- Test 2: strided block (exercises shortcut conv + spatial subsampling)
    layers2 = init_network_block_params(kp2, 2, 4, 8, 2)
    fwd2 = jax.jit(lambda xx: network_block_forward(xx, layers2))
    y2 = jax.block_until_ready(fwd2(x))
    assert y2.shape == (2, 8, 8, 8), y2.shape
    y2_ref = jax.block_until_ready(network_block_ref(x, layers2))
    max_err2 = float(jnp.max(jnp.abs(y2 - y2_ref)))
    assert max_err2 < 5e-2, f"stride=2: max abs err vs reference: {max_err2}"

    print("KERNEL_OK")
</pallas_src>

<mosaic_0001>
module attributes {stable_mosaic.version = 11 : i64} {
  func.func @kernel(%arg0: i32, %arg1: memref<1x8x256xf32, #tpu.memory_space<vmem>>, %arg2: memref<8x1xf32, #tpu.memory_space<vmem>>, %arg3: memref<8x1xf32, #tpu.memory_space<vmem>>, %arg4: memref<8x1xf32, #tpu.memory_space<vmem>>, %arg5: memref<8x72xbf16, #tpu.memory_space<vmem>>, %arg6: memref<8x72xbf16, #tpu.memory_space<vmem>>, %arg7: memref<1x8x256xf32, #tpu.memory_space<vmem>>, %arg8: memref<8x512xbf16, #tpu.memory_space<vmem>>, %arg9: memref<8x512xbf16, #tpu.memory_space<vmem>>, %arg10: memref<72x256xbf16, #tpu.memory_space<vmem>>) attributes {dimension_semantics = [#tpu.dimension_semantics<parallel>], iteration_bounds = array<i64: 2>, scalar_prefetch = 0 : i64, scratch_operands = 3 : i64, tpu.core_type = #tpu.core_type<tc>, window_params = [{transform_indices = @transform_0, window_bounds = array<i64: 1, 8, 256>}, {pipeline_mode = #tpu.pipeline_mode<synchronous>, transform_indices = @transform_1, window_bounds = array<i64: 8, 1>}, {pipeline_mode = #tpu.pipeline_mode<synchronous>, transform_indices = @transform_2, window_bounds = array<i64: 8, 1>}, {pipeline_mode = #tpu.pipeline_mode<synchronous>, transform_indices = @transform_3, window_bounds = array<i64: 8, 1>}, {pipeline_mode = #tpu.pipeline_mode<synchronous>, transform_indices = @transform_4, window_bounds = array<i64: 8, 72>}, {pipeline_mode = #tpu.pipeline_mode<synchronous>, transform_indices = @transform_5, window_bounds = array<i64: 8, 72>}, {transform_indices = @transform_6, window_bounds = array<i64: 1, 8, 256>}]} {
    %cst = arith.constant 0.000000e+00 : bf16
    %0 = vector.broadcast %cst : bf16 to vector<8x128xbf16>
    %c0 = arith.constant 0 : index
    %c0_0 = arith.constant 0 : index
    %1 = vector.load %arg8[%c0, %c0_0] : memref<8x512xbf16, #tpu.memory_space<vmem>>, vector<8x128xbf16>
    tpu.vector_store %arg8[%c0, %c0_0], %0 {strides = array<i32>} : memref<8x512xbf16, #tpu.memory_space<vmem>>, vector<8x128xbf16>,
    %c0_1 = arith.constant 0 : index
    %c384 = arith.constant 384 : index
    %2 = vector.load %arg8[%c0_1, %c384] : memref<8x512xbf16, #tpu.memory_space<vmem>>, vector<8x128xbf16>
    tpu.vector_store %arg8[%c0_1, %c384], %0 {strides = array<i32>} : memref<8x512xbf16, #tpu.memory_space<vmem>>, vector<8x128xbf16>,
    %cst_2 = arith.constant 0.000000e+00 : bf16
    %3 = vector.broadcast %cst_2 : bf16 to vector<8x128xbf16>
    %c0_3 = arith.constant 0 : index
    %c0_4 = arith.constant 0 : index
    %4 = vector.load %arg9[%c0_3, %c0_4] : memref<8x512xbf16, #tpu.memory_space<vmem>>, vector<8x128xbf16>
    tpu.vector_store %arg9[%c0_3, %c0_4], %3 {strides = array<i32>} : memref<8x512xbf16, #tpu.memory_space<vmem>>, vector<8x128xbf16>,
    %c0_5 = arith.constant 0 : index
    %c384_6 = arith.constant 384 : index
    %5 = vector.load %arg9[%c0_5, %c384_6] : memref<8x512xbf16, #tpu.memory_space<vmem>>, vector<8x128xbf16>
    tpu.vector_store %arg9[%c0_5, %c384_6], %3 {strides = array<i32>} : memref<8x512xbf16, #tpu.memory_space<vmem>>, vector<8x128xbf16>,
    %c0_7 = arith.constant 0 : index
    %c0_8 = arith.constant 0 : index
    %c0_9 = arith.constant 0 : index
    %6 = vector.load %arg1[%c0_7, %c0_8, %c0_9] : memref<1x8x256xf32, #tpu.memory_space<vmem>>, vector<1x8x256xf32>
    %7 = vector.shape_cast %6 : vector<1x8x256xf32> to vector<8x256xf32>
    %c0_10 = arith.constant 0 : index
    %c0_11 = arith.constant 0 : index
    %8 = vector.load %arg2[%c0_10, %c0_11] : memref<8x1xf32, #tpu.memory_space<vmem>>, vector<8x1xf32>
    %9 = vector.broadcast %8 : vector<8x1xf32> to vector<8x256xf32>
    %10 = arith.mulf %7, %9 : vector<8x256xf32>
    %c0_12 = arith.constant 0 : index
    %c0_13 = arith.constant 0 : index
    %11 = vector.load %arg3[%c0_12, %c0_13] : memref<8x1xf32, #tpu.memory_space<vmem>>, vector<8x1xf32>
    %12 = vector.broadcast %11 : vector<8x1xf32> to vector<8x256xf32>
    %13 = arith.addf %10, %12 : vector<8x256xf32>
    %cst_14 = arith.constant 0.000000e+00 : f32
    %14 = vector.broadcast %cst_14 : f32 to vector<8x256xf32>
    %15 = arith.maximumf %13, %14 : vector<8x256xf32>
    %16 = arith.truncf %15 : vector<8x256xf32> to vector<8x256xbf16>
    %c0_15 = arith.constant 0 : index
    %c128 = arith.constant 128 : index
    %17 = vector.load %arg8[%c0_15, %c128] : memref<8x512xbf16, #tpu.memory_space<vmem>>, vector<8x256xbf16>
    tpu.vector_store %arg8[%c0_15, %c128], %16 {strides = array<i32>} : memref<8x512xbf16, #tpu.memory_space<vmem>>, vector<8x256xbf16>,
    %18 = tpu.iota {dimensions = array<i32: 1>} : vector<1x256xi32>
    %c16_i32 = arith.constant 16 : i32
    %c0_i32 = arith.constant 0 : i32
    %19 = arith.cmpi eq, %c16_i32, %c0_i32 : i32
    %c1_i32 = arith.constant 1 : i32
    %20 = arith.select %19, %c1_i32, %c16_i32 : i32
    %21 = vector.broadcast %20 : i32 to vector<1x256xi32>
    %22 = arith.remsi %18, %21 : vector<1x256xi32>
    %c0_i32_16 = arith.constant 0 : i32
    %23 = vector.broadcast %c0_i32_16 : i32 to vector<1x256xi32>
    %24 = arith.cmpi ne, %22, %23 : vector<1x256xi32>
    %c0_i32_17 = arith.constant 0 : i32
    %25 = vector.broadcast %c0_i32_17 : i32 to vector<1x256xi32>
    %26 = arith.cmpi slt, %22, %25 : vector<1x256xi32>
    %c0_i32_18 = arith.constant 0 : i32
    %27 = arith.cmpi slt, %20, %c0_i32_18 : i32
    %28 = vector.broadcast %27 : i1 to vector<1x256xi1>
    %29 = vector.broadcast %28 : vector<1x256xi1> to vector<1x256xi1>
    %30 = arith.xori %26, %29 : vector<1x256xi1>
    %31 = arith.andi %30, %24 : vector<1x256xi1>
    %32 = vector.broadcast %20 : i32 to vector<1x256xi32>
    %33 = arith.addi %22, %32 : vector<1x256xi32>
    %34 = arith.select %31, %33, %22 : vector<1x256xi1>, vector<1x256xi32>
    %c0_i32_19 = arith.constant 0 : i32
    %35 = vector.broadcast %c0_i32_19 : i32 to vector<1x256xi32>
    %36 = arith.cmpi sgt, %34, %35 : vector<1x256xi32>
    %c15_i32 = arith.constant 15 : i32
    %37 = vector.broadcast %c15_i32 : i32 to vector<1x256xi32>
    %38 = arith.cmpi slt, %34, %37 : vector<1x256xi32>
    %c0_20 = arith.constant 0 : index
    %c111 = arith.constant 111 : index
    %39 = vector.load %arg8[%c0_20, %c111] : memref<8x512xbf16, #tpu.memory_space<vmem>>, vector<8x256xbf16>
    %cst_21 = arith.constant 0.000000e+00 : bf16
    %40 = vector.broadcast %cst_21 : bf16 to vector<8x256xbf16>
    %41 = vector.shape_cast %36 : vector<1x256xi1> to vector<1x256xi1>
    %42 = vector.broadcast %41 : vector<1x256xi1> to vector<8x256xi1>
    %43 = arith.select %42, %39, %40 : vector<8x256xi1>, vector<8x256xbf16>
    %c0_22 = arith.constant 0 : index
    %c0_23 = arith.constant 0 : index
    %44 = vector.load %arg10[%c0_22, %c0_23] : memref<72x256xbf16, #tpu.memory_space<vmem>>, vector<8x256xbf16>
    tpu.vector_store %arg10[%c0_22, %c0_23], %43 {strides = array<i32>} : memref<72x256xbf16, #tpu.memory_space<vmem>>, vector<8x256xbf16>,
    %c0_24 = arith.constant 0 : index
    %c112 = arith.constant 112 : index
    %45 = vector.load %arg8[%c0_24, %c112] : memref<8x512xbf16, #tpu.memory_space<vmem>>, vector<8x256xbf16>
    %c8 = arith.constant 8 : index
    %c0_25 = arith.constant 0 : index
    %46 = vector.load %arg10[%c8, %c0_25] : memref<72x256xbf16, #tpu.memory_space<vmem>>, vector<8x256xbf16>
    tpu.vector_store %arg10[%c8, %c0_25], %45 {strides = array<i32>} : memref<72x256xbf16, #tpu.memory_space<vmem>>, vector<8x256xbf16>,
    %c0_26 = arith.constant 0 : index
    %c113 = arith.constant 113 : index
    %47 = vector.load %arg8[%c0_26, %c113] : memref<8x512xbf16, #tpu.memory_space<vmem>>, vector<8x256xbf16>
    %cst_27 = arith.constant 0.000000e+00 : bf16
    %48 = vector.broadcast %cst_27 : bf16 to vector<8x256xbf16>
    %49 = vector.shape_cast %38 : vector<1x256xi1> to vector<1x256xi1>
    %50 = vector.broadcast %49 : vector<1x256xi1> to vector<8x256xi1>
    %51 = arith.select %50, %47, %48 : vector<8x256xi1>, vector<8x256xbf16>
    %c16 = arith.constant 16 : index
    %c0_28 = arith.constant 0 : index
    %52 = vector.load %arg10[%c16, %c0_28] : memref<72x256xbf16, #tpu.memory_space<vmem>>, vector<8x256xbf16>
    tpu.vector_store %arg10[%c16, %c0_28], %51 {strides = array<i32>} : memref<72x256xbf16, #tpu.memory_space<vmem>>, vector<8x256xbf16>,
    %c0_29 = arith.constant 0 : index
    %c127 = arith.constant 127 : index
    %53 = vector.load %arg8[%c0_29, %c127] : memref<8x512xbf16, #tpu.memory_space<vmem>>, vector<8x256xbf16>
    %cst_30 = arith.constant 0.000000e+00 : bf16
    %54 = vector.broadcast %cst_30 : bf16 to vector<8x256xbf16>
    %55 = vector.shape_cast %36 : vector<1x256xi1> to vector<1x256xi1>
    %56 = vector.broadcast %55 : vector<1x256xi1> to vector<8x256xi1>
    %57 = arith.select %56, %53, %54 : vector<8x256xi1>, vector<8x256xbf16>
    %c24 = arith.constant 24 : index
    %c0_31 = arith.constant 0 : index
    %58 = vector.load %arg10[%c24, %c0_31] : memref<72x256xbf16, #tpu.memory_space<vmem>>, vector<8x256xbf16>
    tpu.vector_store %arg10[%c24, %c0_31], %57 {strides = array<i32>} : memref<72x256xbf16, #tpu.memory_space<vmem>>, vector<8x256xbf16>,
    %c0_32 = arith.constant 0 : index
    %c128_33 = arith.constant 128 : index
    %59 = vector.load %arg8[%c0_32, %c128_33] : memref<8x512xbf16, #tpu.memory_space<vmem>>, vector<8x256xbf16>
    %c32 = arith.constant 32 : index
    %c0_34 = arith.constant 0 : index
    %60 = vector.load %arg10[%c32, %c0_34] : memref<72x256xbf16, #tpu.memory_space<vmem>>, vector<8x256xbf16>
    tpu.vector_store %arg10[%c32, %c0_34], %59 {strides = array<i32>} : memref<72x256xbf16, #tpu.memory_space<vmem>>, vector<8x256xbf16>,
    %c0_35 = arith.constant 0 : index
    %c129 = arith.constant 129 : index
    %61 = vector.load %arg8[%c0_35, %c129] : memref<8x512xbf16, #tpu.memory_space<vmem>>, vector<8x256xbf16>
    %cst_36 = arith.constant 0.000000e+00 : bf16
    %62 = vector.broadcast %cst_36 : bf16 to vector<8x256xbf16>
    %63 = vector.shape_cast %38 : vector<1x256xi1> to vector<1x256xi1>
    %64 = vector.broadcast %63 : vector<1x256xi1> to vector<8x256xi1>
    %65 = arith.select %64, %61, %62 : vector<8x256xi1>, vector<8x256xbf16>
    %c40 = arith.constant 40 : index
    %c0_37 = arith.constant 0 : index
    %66 = vector.load %arg10[%c40, %c0_37] : memref<72x256xbf16, #tpu.memory_space<vmem>>, vector<8x256xbf16>
    tpu.vector_store %arg10[%c40, %c0_37], %65 {strides = array<i32>} : memref<72x256xbf16, #tpu.memory_space<vmem>>, vector<8x256xbf16>,
    %c0_38 = arith.constant 0 : index
    %c143 = arith.constant 143 : index
    %67 = vector.load %arg8[%c0_38, %c143] : memref<8x512xbf16, #tpu.memory_space<vmem>>, vector<8x256xbf16>
    %cst_39 = arith.constant 0.000000e+00 : bf16
    %68 = vector.broadcast %cst_39 : bf16 to vector<8x256xbf16>
    %69 = vector.shape_cast %36 : vector<1x256xi1> to vector<1x256xi1>
    %70 = vector.broadcast %69 : vector<1x256xi1> to vector<8x256xi1>
    %71 = arith.select %70, %67, %68 : vector<8x256xi1>, vector<8x256xbf16>
    %c48 = arith.constant 48 : index
    %c0_40 = arith.constant 0 : index
    %72 = vector.load %arg10[%c48, %c0_40] : memref<72x256xbf16, #tpu.memory_space<vmem>>, vector<8x256xbf16>
    tpu.vector_store %arg10[%c48, %c0_40], %71 {strides = array<i32>} : memref<72x256xbf16, #tpu.memory_space<vmem>>, vector<8x256xbf16>,
    %c0_41 = arith.constant 0 : index
    %c144 = arith.constant 144 : index
    %73 = vector.load %arg8[%c0_41, %c144] : memref<8x512xbf16, #tpu.memory_space<vmem>>, vector<8x256xbf16>
    %c56 = arith.constant 56 : index
    %c0_42 = arith.constant 0 : index
    %74 = vector.load %arg10[%c56, %c0_42] : memref<72x256xbf16, #tpu.memory_space<vmem>>, vector<8x256xbf16>
    tpu.vector_store %arg10[%c56, %c0_42], %73 {strides = array<i32>} : memref<72x256xbf16, #tpu.memory_space<vmem>>, vector<8x256xbf16>,
    %c0_43 = arith.constant 0 : index
    %c145 = arith.constant 145 : index
    %75 = vector.load %arg8[%c0_43, %c145] : memref<8x512xbf16, #tpu.memory_space<vmem>>, vector<8x256xbf16>
    %cst_44 = arith.constant 0.000000e+00 : bf16
    %76 = vector.broadcast %cst_44 : bf16 to vector<8x256xbf16>
    %77 = vector.shape_cast %38 : vector<1x256xi1> to vector<1x256xi1>
    %78 = vector.broadcast %77 : vector<1x256xi1> to vector<8x256xi1>
    %79 = arith.select %78, %75, %76 : vector<8x256xi1>, vector<8x256xbf16>
    %c64 = arith.constant 64 : index
    %c0_45 = arith.constant 0 : index
    %80 = vector.load %arg10[%c64, %c0_45] : memref<72x256xbf16, #tpu.memory_space<vmem>>, vector<8x256xbf16>
    tpu.vector_store %arg10[%c64, %c0_45], %79 {strides = array<i32>} : memref<72x256xbf16, #tpu.memory_space<vmem>>, vector<8x256xbf16>,
    %c0_46 = arith.constant 0 : index
    %c0_47 = arith.constant 0 : index
    %81 = vector.load %arg5[%c0_46, %c0_47] : memref<8x72xbf16, #tpu.memory_space<vmem>>, vector<8x72xbf16>
    %c0_48 = arith.constant 0 : index
    %c0_49 = arith.constant 0 : index
    %82 = vector.load %arg10[%c0_48, %c0_49] : memref<72x256xbf16, #tpu.memory_space<vmem>>, vector<72x256xbf16>
    %cst_50 = arith.constant dense<0.000000e+00> : vector<8x256xf32>
    %83 = tpu.matmul %81, %82, %cst_50 {dimension_numbers = #tpu.dot_dimension_numbers<[1], [0], [0], [1], [0, 0, 1, 1], [], []>} : vector<8x72xbf16>, vector<72x256xbf16>, vector<8x256xf32> -> vector<8x256xf32>
    %c0_51 = arith.constant 0 : index
    %c0_52 = arith.constant 0 : index
    %84 = vector.load %arg4[%c0_51, %c0_52] : memref<8x1xf32, #tpu.memory_space<vmem>>, vector<8x1xf32>
    %85 = vector.broadcast %84 : vector<8x1xf32> to vector<8x256xf32>
    %86 = arith.addf %83, %85 : vector<8x256xf32>
    %cst_53 = arith.constant 0.000000e+00 : f32
    %87 = vector.broadcast %cst_53 : f32 to vector<8x256xf32>
    %88 = arith.maximumf %86, %87 : vector<8x256xf32>
    %89 = arith.truncf %88 : vector<8x256xf32> to vector<8x256xbf16>
    %c0_54 = arith.constant 0 : index
    %c128_55 = arith.constant 128 : index
    %90 = vector.load %arg9[%c0_54, %c128_55] : memref<8x512xbf16, #tpu.memory_space<vmem>>, vector<8x256xbf16>
    tpu.vector_store %arg9[%c0_54, %c128_55], %89 {strides = array<i32>} : memref<8x512xbf16, #tpu.memory_space<vmem>>, vector<8x256xbf16>,
    %c0_56 = arith.constant 0 : index
    %c0_57 = arith.constant 0 : index
    %c0_58 = arith.constant 0 : index
    %91 = vector.load %arg1[%c0_56, %c0_57, %c0_58] : memref<1x8x256xf32, #tpu.memory_space<vmem>>, vector<1x8x256xf32>
    %92 = vector.shape_cast %91 : vector<1x8x256xf32> to vector<8x256xf32>
    %93 = tpu.iota {dimensions = array<i32: 1>} : vector<1x256xi32>
    %c16_i32_59 = arith.constant 16 : i32
    %c0_i32_60 = arith.constant 0 : i32
    %94 = arith.cmpi eq, %c16_i32_59, %c0_i32_60 : i32
    %c1_i32_61 = arith.constant 1 : i32
    %95 = arith.select %94, %c1_i32_61, %c16_i32_59 : i32
    %96 = vector.broadcast %95 : i32 to vector<1x256xi32>
    %97 = arith.remsi %93, %96 : vector<1x256xi32>
    %c0_i32_62 = arith.constant 0 : i32
    %98 = vector.broadcast %c0_i32_62 : i32 to vector<1x256xi32>
    %99 = arith.cmpi ne, %97, %98 : vector<1x256xi32>
    %c0_i32_63 = arith.constant 0 : i32
    %100 = vector.broadcast %c0_i32_63 : i32 to vector<1x256xi32>
    %101 = arith.cmpi slt, %97, %100 : vector<1x256xi32>
    %c0_i32_64 = arith.constant 0 : i32
    %102 = arith.cmpi slt, %95, %c0_i32_64 : i32
    %103 = vector.broadcast %102 : i1 to vector<1x256xi1>
    %104 = vector.broadcast %103 : vector<1x256xi1> to vector<1x256xi1>
    %105 = arith.xori %101, %104 : vector<1x256xi1>
    %106 = arith.andi %105, %99 : vector<1x256xi1>
    %107 = vector.broadcast %95 : i32 to vector<1x256xi32>
    %108 = arith.addi %97, %107 : vector<1x256xi32>
    %109 = arith.select %106, %108, %97 : vector<1x256xi1>, vector<1x256xi32>
    %c0_i32_65 = arith.constant 0 : i32
    %110 = vector.broadcast %c0_i32_65 : i32 to vector<1x256xi32>
    %111 = arith.cmpi sgt, %109, %110 : vector<1x256xi32>
    %c15_i32_66 = arith.constant 15 : i32
    %112 = vector.broadcast %c15_i32_66 : i32 to vector<1x256xi32>
    %113 = arith.cmpi slt, %109, %112 : vector<1x256xi32>
    %c0_67 = arith.constant 0 : index
    %c111_68 = arith.constant 111 : index
    %114 = vector.load %arg9[%c0_67, %c111_68] : memref<8x512xbf16, #tpu.memory_space<vmem>>, vector<8x256xbf16>
    %cst_69 = arith.constant 0.000000e+00 : bf16
    %115 = vector.broadcast %cst_69 : bf16 to vector<8x256xbf16>
    %116 = vector.shape_cast %111 : vector<1x256xi1> to vector<1x256xi1>
    %117 = vector.broadcast %116 : vector<1x256xi1> to vector<8x256xi1>
    %118 = arith.select %117, %114, %115 : vector<8x256xi1>, vector<8x256xbf16>
    %c0_70 = arith.constant 0 : index
    %c0_71 = arith.constant 0 : index
    %119 = vector.load %arg10[%c0_70, %c0_71] : memref<72x256xbf16, #tpu.memory_space<vmem>>, vector<8x256xbf16>
    tpu.vector_store %arg10[%c0_70, %c0_71], %118 {strides = array<i32>} : memref<72x256xbf16, #tpu.memory_space<vmem>>, vector<8x256xbf16>,
    %c0_72 = arith.constant 0 : index
    %c112_73 = arith.constant 112 : index
    %120 = vector.load %arg9[%c0_72, %c112_73] : memref<8x512xbf16, #tpu.memory_space<vmem>>, vector<8x256xbf16>
    %c8_74 = arith.constant 8 : index
    %c0_75 = arith.constant 0 : index
    %121 = vector.load %arg10[%c8_74, %c0_75] : memref<72x256xbf16, #tpu.memory_space<vmem>>, vector<8x256xbf16>
    tpu.vector_store %arg10[%c8_74, %c0_75], %120 {strides = array<i32>} : memref<72x256xbf16, #tpu.memory_space<vmem>>, vector<8x256xbf16>,
    %c0_76 = arith.constant 0 : index
    %c113_77 = arith.constant 113 : index
    %122 = vector.load %arg9[%c0_76, %c113_77] : memref<8x512xbf16, #tpu.memory_space<vmem>>, vector<8x256xbf16>
    %cst_78 = arith.constant 0.000000e+00 : bf16
    %123 = vector.broadcast %cst_78 : bf16 to vector<8x256xbf16>
    %124 = vector.shape_cast %113 : vector<1x256xi1> to vector<1x256xi1>
    %125 = vector.broadcast %124 : vector<1x256xi1> to vector<8x256xi1>
    %126 = arith.select %125, %122, %123 : vector<8x256xi1>, vector<8x256xbf16>
    %c16_79 = arith.constant 16 : index
    %c0_80 = arith.constant 0 : index
    %127 = vector.load %arg10[%c16_79, %c0_80] : memref<72x256xbf16, #tpu.memory_space<vmem>>, vector<8x256xbf16>
    tpu.vector_store %arg10[%c16_79, %c0_80], %126 {strides = array<i32>} : memref<72x256xbf16, #tpu.memory_space<vmem>>, vector<8x256xbf16>,
    %c0_81 = arith.constant 0 : index
    %c127_82 = arith.constant 127 : index
    %128 = vector.load %arg9[%c0_81, %c127_82] : memref<8x512xbf16, #tpu.memory_space<vmem>>, vector<8x256xbf16>
    %cst_83 = arith.constant 0.000000e+00 : bf16
    %129 = vector.broadcast %cst_83 : bf16 to vector<8x256xbf16>
    %130 = vector.shape_cast %111 : vector<1x256xi1> to vector<1x256xi1>
    %131 = vector.broadcast %130 : vector<1x256xi1> to vector<8x256xi1>
    %132 = arith.select %131, %128, %129 : vector<8x256xi1>, vector<8x256xbf16>
    %c24_84 = arith.constant 24 : index
    %c0_85 = arith.constant 0 : index
    %133 = vector.load %arg10[%c24_84, %c0_85] : memref<72x256xbf16, #tpu.memory_space<vmem>>, vector<8x256xbf16>
    tpu.vector_store %arg10[%c24_84, %c0_85], %132 {strides = array<i32>} : memref<72x256xbf16, #tpu.memory_space<vmem>>, vector<8x256xbf16>,
    %c0_86 = arith.constant 0 : index
    %c128_87 = arith.constant 128 : index
    %134 = vector.load %arg9[%c0_86, %c128_87] : memref<8x512xbf16, #tpu.memory_space<vmem>>, vector<8x256xbf16>
    %c32_88 = arith.constant 32 : index
    %c0_89 = arith.constant 0 : index
    %135 = vector.load %arg10[%c32_88, %c0_89] : memref<72x256xbf16, #tpu.memory_space<vmem>>, vector<8x256xbf16>
    tpu.vector_store %arg10[%c32_88, %c0_89], %134 {strides = array<i32>} : memref<72x256xbf16, #tpu.memory_space<vmem>>, vector<8x256xbf16>,
    %c0_90 = arith.constant 0 : index
    %c129_91 = arith.constant 129 : index
    %136 = vector.load %arg9[%c0_90, %c129_91] : memref<8x512xbf16, #tpu.memory_space<vmem>>, vector<8x256xbf16>
    %cst_92 = arith.constant 0.000000e+00 : bf16
    %137 = vector.broadcast %cst_92 : bf16 to vector<8x256xbf16>
    %138 = vector.shape_cast %113 : vector<1x256xi1> to vector<1x256xi1>
    %139 = vector.broadcast %138 : vector<1x256xi1> to vector<8x256xi1>
    %140 = arith.select %139, %136, %137 : vector<8x256xi1>, vector<8x256xbf16>
    %c40_93 = arith.constant 40 : index
    %c0_94 = arith.constant 0 : index
    %141 = vector.load %arg10[%c40_93, %c0_94] : memref<72x256xbf16, #tpu.memory_space<vmem>>, vector<8x256xbf16>
    tpu.vector_store %arg10[%c40_93, %c0_94], %140 {strides = array<i32>} : memref<72x256xbf16, #tpu.memory_space<vmem>>, vector<8x256xbf16>,
    %c0_95 = arith.constant 0 : index
    %c143_96 = arith.constant 143 : index
    %142 = vector.load %arg9[%c0_95, %c143_96] : memref<8x512xbf16, #tpu.memory_space<vmem>>, vector<8x256xbf16>
    %cst_97 = arith.constant 0.000000e+00 : bf16
    %143 = vector.broadcast %cst_97 : bf16 to vector<8x256xbf16>
    %144 = vector.shape_cast %111 : vector<1x256xi1> to vector<1x256xi1>
    %145 = vector.broadcast %144 : vector<1x256xi1> to vector<8x256xi1>
    %146 = arith.select %145, %142, %143 : vector<8x256xi1>, vector<8x256xbf16>
    %c48_98 = arith.constant 48 : index
    %c0_99 = arith.constant 0 : index
    %147 = vector.load %arg10[%c48_98, %c0_99] : memref<72x256xbf16, #tpu.memory_space<vmem>>, vector<8x256xbf16>
    tpu.vector_store %arg10[%c48_98, %c0_99], %146 {strides = array<i32>} : memref<72x256xbf16, #tpu.memory_space<vmem>>, vector<8x256xbf16>,
    %c0_100 = arith.constant 0 : index
    %c144_101 = arith.constant 144 : index
    %148 = vector.load %arg9[%c0_100, %c144_101] : memref<8x512xbf16, #tpu.memory_space<vmem>>, vector<8x256xbf16>
    %c56_102 = arith.constant 56 : index
    %c0_103 = arith.constant 0 : index
    %149 = vector.load %arg10[%c56_102, %c0_103] : memref<72x256xbf16, #tpu.memory_space<vmem>>, vector<8x256xbf16>
    tpu.vector_store %arg10[%c56_102, %c0_103], %148 {strides = array<i32>} : memref<72x256xbf16, #tpu.memory_space<vmem>>, vector<8x256xbf16>,
    %c0_104 = arith.constant 0 : index
    %c145_105 = arith.constant 145 : index
    %150 = vector.load %arg9[%c0_104, %c145_105] : memref<8x512xbf16, #tpu.memory_space<vmem>>, vector<8x256xbf16>
    %cst_106 = arith.constant 0.000000e+00 : bf16
    %151 = vector.broadcast %cst_106 : bf16 to vector<8x256xbf16>
    %152 = vector.shape_cast %113 : vector<1x256xi1> to vector<1x256xi1>
    %153 = vector.broadcast %152 : vector<1x256xi1> to vector<8x256xi1>
    %154 = arith.select %153, %150, %151 : vector<8x256xi1>, vector<8x256xbf16>
    %c64_107 = arith.constant 64 : index
    %c0_108 = arith.constant 0 : index
    %155 = vector.load %arg10[%c64_107, %c0_108] : memref<72x256xbf16, #tpu.memory_space<vmem>>, vector<8x256xbf16>
    tpu.vector_store %arg10[%c64_107, %c0_108], %154 {strides = array<i32>} : memref<72x256xbf16, #tpu.memory_space<vmem>>, vector<8x256xbf16>,
    %c0_109 = arith.constant 0 : index
    %c0_110 = arith.constant 0 : index
    %156 = vector.load %arg6[%c0_109, %c0_110] : memref<8x72xbf16, #tpu.memory_space<vmem>>, vector<8x72xbf16>
    %c0_111 = arith.constant 0 : index
    %c0_112 = arith.constant 0 : index
    %157 = vector.load %arg10[%c0_111, %c0_112] : memref<72x256xbf16, #tpu.memory_space<vmem>>, vector<72x256xbf16>
    %cst_113 = arith.constant dense<0.000000e+00> : vector<8x256xf32>
    %158 = tpu.matmul %156, %157, %cst_113 {dimension_numbers = #tpu.dot_dimension_numbers<[1], [0], [0], [1], [0, 0, 1, 1], [], []>} : vector<8x72xbf16>, vector<72x256xbf16>, vector<8x256xf32> -> vector<8x256xf32>
    %159 = arith.addf %158, %92 : vector<8x256xf32>
    %c0_114 = arith.constant 0 : index
    %c0_115 = arith.constant 0 : index
    %c0_116 = arith.constant 0 : index
    %160 = vector.load %arg7[%c0_114, %c0_115, %c0_116] : memref<1x8x256xf32, #tpu.memory_space<vmem>>, vector<1x8x256xf32>
    %161 = vector.shape_cast %160 : vector<1x8x256xf32> to vector<8x256xf32>
    %162 = vector.shape_cast %159 : vector<8x256xf32> to vector<1x8x256xf32>
    tpu.vector_store %arg7[%c0_114, %c0_115, %c0_116], %162 {strides = array<i32>} : memref<1x8x256xf32, #tpu.memory_space<vmem>>, vector<1x8x256xf32>,
    return
  }
  func.func @transform_0(%arg0: i32) -> (i32, i32, i32) {
    %c0_i32 = arith.constant 0 : i32
    %c0_i32_0 = arith.constant 0 : i32
    %c0_i32_1 = arith.constant 0 : i32
    return %arg0, %c0_i32, %c0_i32_0 : i32, i32, i32
  }
  func.func @transform_1(%arg0: i32) -> (i32, i32) {
    %c0_i32 = arith.constant 0 : i32
    %c0_i32_0 = arith.constant 0 : i32
    %c0_i32_1 = arith.constant 0 : i32
    return %c0_i32, %c0_i32_0 : i32, i32
  }
  func.func @transform_2(%arg0: i32) -> (i32, i32) {
    %c0_i32 = arith.constant 0 : i32
    %c0_i32_0 = arith.constant 0 : i32
    %c0_i32_1 = arith.constant 0 : i32
    return %c0_i32, %c0_i32_0 : i32, i32
  }
  func.func @transform_3(%arg0: i32) -> (i32, i32) {
    %c0_i32 = arith.constant 0 : i32
    %c0_i32_0 = arith.constant 0 : i32
    %c0_i32_1 = arith.constant 0 : i32
    return %c0_i32, %c0_i32_0 : i32, i32
  }
  func.func @transform_4(%arg0: i32) -> (i32, i32) {
    %c0_i32 = arith.constant 0 : i32
    %c0_i32_0 = arith.constant 0 : i32
    %c0_i32_1 = arith.constant 0 : i32
    return %c0_i32, %c0_i32_0 : i32, i32
  }
  func.func @transform_5(%arg0: i32) -> (i32, i32) {
    %c0_i32 = arith.constant 0 : i32
    %c0_i32_0 = arith.constant 0 : i32
    %c0_i32_1 = arith.constant 0 : i32
    return %c0_i32, %c0_i32_0 : i32, i32
  }
  func.func @transform_6(%arg0: i32) -> (i32, i32, i32) {
    %c0_i32 = arith.constant 0 : i32
    %c0_i32_0 = arith.constant 0 : i32
    %c0_i32_1 = arith.constant 0 : i32
    return %arg0, %c0_i32, %c0_i32_0 : i32, i32, i32
  }
}

module attributes {stable_mosaic.version = 11 : i64} {
  func.func @kernel(%arg0: i32, %arg1: memref<1x4x256xf32, #tpu.memory_space<vmem>>, %arg2: memref<4x1xf32, #tpu.memory_space<vmem>>, %arg3: memref<4x1xf32, #tpu.memory_space<vmem>>, %arg4: memref<8x1xf32, #tpu.memory_space<vmem>>, %arg5: memref<8x72xbf16, #tpu.memory_space<vmem>>, %arg6: memref<8x72xbf16, #tpu.memory_space<vmem>>, %arg7: memref<8x8xbf16, #tpu.memory_space<vmem>>, %arg8: memref<1x8x256xf32, #tpu.memory_space<vmem>>, %arg9: memref<8x512xbf16, #tpu.memory_space<vmem>>, %arg10: memref<8x512xbf16, #tpu.memory_space<vmem>>, %arg11: memref<72x256xbf16, #tpu.memory_space<vmem>>) attributes {dimension_semantics = [#tpu.dimension_semantics<parallel>], iteration_bounds = array<i64: 2>, scalar_prefetch = 0 : i64, scratch_operands = 3 : i64, tpu.core_type = #tpu.core_type<tc>, window_params = [{transform_indices = @transform_0, window_bounds = array<i64: 1, 4, 256>}, {pipeline_mode = #tpu.pipeline_mode<synchronous>, transform_indices = @transform_1, window_bounds = array<i64: 4, 1>}, {pipeline_mode = #tpu.pipeline_mode<synchronous>, transform_indices = @transform_2, window_bounds = array<i64: 4, 1>}, {pipeline_mode = #tpu.pipeline_mode<synchronous>, transform_indices = @transform_3, window_bounds = array<i64: 8, 1>}, {pipeline_mode = #tpu.pipeline_mode<synchronous>, transform_indices = @transform_4, window_bounds = array<i64: 8, 72>}, {pipeline_mode = #tpu.pipeline_mode<synchronous>, transform_indices = @transform_5, window_bounds = array<i64: 8, 72>}, {pipeline_mode = #tpu.pipeline_mode<synchronous>, transform_indices = @transform_6, window_bounds = array<i64: 8, 8>}, {transform_indices = @transform_7, window_bounds = array<i64: 1, 8, 256>}]} {
    %cst = arith.constant 0.000000e+00 : bf16
    %0 = vector.broadcast %cst : bf16 to vector<8x128xbf16>
    %c0 = arith.constant 0 : index
    %c0_0 = arith.constant 0 : index
    %1 = vector.load %arg9[%c0, %c0_0] : memref<8x512xbf16, #tpu.memory_space<vmem>>, vector<8x128xbf16>
    tpu.vector_store %arg9[%c0, %c0_0], %0 {strides = array<i32>} : memref<8x512xbf16, #tpu.memory_space<vmem>>, vector<8x128xbf16>,
    %c0_1 = arith.constant 0 : index
    %c384 = arith.constant 384 : index
    %2 = vector.load %arg9[%c0_1, %c384] : memref<8x512xbf16, #tpu.memory_space<vmem>>, vector<8x128xbf16>
    tpu.vector_store %arg9[%c0_1, %c384], %0 {strides = array<i32>} : memref<8x512xbf16, #tpu.memory_space<vmem>>, vector<8x128xbf16>,
    %cst_2 = arith.constant 0.000000e+00 : bf16
    %3 = vector.broadcast %cst_2 : bf16 to vector<4x256xbf16>
    %c4 = arith.constant 4 : index
    %c128 = arith.constant 128 : index
    %4 = vector.load %arg9[%c4, %c128] : memref<8x512xbf16, #tpu.memory_space<vmem>>, vector<4x256xbf16>
    tpu.vector_store %arg9[%c4, %c128], %3 {strides = array<i32>} : memref<8x512xbf16, #tpu.memory_space<vmem>>, vector<4x256xbf16>,
    %cst_3 = arith.constant 0.000000e+00 : bf16
    %5 = vector.broadcast %cst_3 : bf16 to vector<8x128xbf16>
    %c0_4 = arith.constant 0 : index
    %c0_5 = arith.constant 0 : index
    %6 = vector.load %arg10[%c0_4, %c0_5] : memref<8x512xbf16, #tpu.memory_space<vmem>>, vector<8x128xbf16>
    tpu.vector_store %arg10[%c0_4, %c0_5], %5 {strides = array<i32>} : memref<8x512xbf16, #tpu.memory_space<vmem>>, vector<8x128xbf16>,
    %c0_6 = arith.constant 0 : index
    %c384_7 = arith.constant 384 : index
    %7 = vector.load %arg10[%c0_6, %c384_7] : memref<8x512xbf16, #tpu.memory_space<vmem>>, vector<8x128xbf16>
    tpu.vector_store %arg10[%c0_6, %c384_7], %5 {strides = array<i32>} : memref<8x512xbf16, #tpu.memory_space<vmem>>, vector<8x128xbf16>,
    %c0_8 = arith.constant 0 : index
    %c0_9 = arith.constant 0 : index
    %c0_10 = arith.constant 0 : index
    %8 = vector.load %arg1[%c0_8, %c0_9, %c0_10] : memref<1x4x256xf32, #tpu.memory_space<vmem>>, vector<1x4x256xf32>
    %9 = vector.shape_cast %8 : vector<1x4x256xf32> to vector<4x256xf32>
    %c0_11 = arith.constant 0 : index
    %c0_12 = arith.constant 0 : index
    %10 = vector.load %arg2[%c0_11, %c0_12] : memref<4x1xf32, #tpu.memory_space<vmem>>, vector<4x1xf32>
    %11 = vector.broadcast %10 : vector<4x1xf32> to vector<4x256xf32>
    %12 = arith.mulf %9, %11 : vector<4x256xf32>
    %c0_13 = arith.constant 0 : index
    %c0_14 = arith.constant 0 : index
    %13 = vector.load %arg3[%c0_13, %c0_14] : memref<4x1xf32, #tpu.memory_space<vmem>>, vector<4x1xf32>
    %14 = vector.broadcast %13 : vector<4x1xf32> to vector<4x256xf32>
    %15 = arith.addf %12, %14 : vector<4x256xf32>
    %cst_15 = arith.constant 0.000000e+00 : f32
    %16 = vector.broadcast %cst_15 : f32 to vector<4x256xf32>
    %17 = arith.maximumf %15, %16 : vector<4x256xf32>
    %18 = arith.truncf %17 : vector<4x256xf32> to vector<4x256xbf16>
    %c0_16 = arith.constant 0 : index
    %c128_17 = arith.constant 128 : index
    %19 = vector.load %arg9[%c0_16, %c128_17] : memref<8x512xbf16, #tpu.memory_space<vmem>>, vector<4x256xbf16>
    tpu.vector_store %arg9[%c0_16, %c128_17], %18 {strides = array<i32>} : memref<8x512xbf16, #tpu.memory_space<vmem>>, vector<4x256xbf16>,
    %20 = tpu.iota {dimensions = array<i32: 1>} : vector<1x256xi32>
    %c16_i32 = arith.constant 16 : i32
    %c0_i32 = arith.constant 0 : i32
    %21 = arith.cmpi eq, %c16_i32, %c0_i32 : i32
    %c1_i32 = arith.constant 1 : i32
    %22 = arith.select %21, %c1_i32, %c16_i32 : i32
    %23 = vector.broadcast %22 : i32 to vector<1x256xi32>
    %24 = arith.remsi %20, %23 : vector<1x256xi32>
    %c0_i32_18 = arith.constant 0 : i32
    %25 = vector.broadcast %c0_i32_18 : i32 to vector<1x256xi32>
    %26 = arith.cmpi ne, %24, %25 : vector<1x256xi32>
    %c0_i32_19 = arith.constant 0 : i32
    %27 = vector.broadcast %c0_i32_19 : i32 to vector<1x256xi32>
    %28 = arith.cmpi slt, %24, %27 : vector<1x256xi32>
    %c0_i32_20 = arith.constant 0 : i32
    %29 = arith.cmpi slt, %22, %c0_i32_20 : i32
    %30 = vector.broadcast %29 : i1 to vector<1x256xi1>
    %31 = vector.broadcast %30 : vector<1x256xi1> to vector<1x256xi1>
    %32 = arith.xori %28, %31 : vector<1x256xi1>
    %33 = arith.andi %32, %26 : vector<1x256xi1>
    %34 = vector.broadcast %22 : i32 to vector<1x256xi32>
    %35 = arith.addi %24, %34 : vector<1x256xi32>
    %36 = arith.select %33, %35, %24 : vector<1x256xi1>, vector<1x256xi32>
    %c0_i32_21 = arith.constant 0 : i32
    %37 = vector.broadcast %c0_i32_21 : i32 to vector<1x256xi32>
    %38 = arith.cmpi sgt, %36, %37 : vector<1x256xi32>
    %c15_i32 = arith.constant 15 : i32
    %39 = vector.broadcast %c15_i32 : i32 to vector<1x256xi32>
    %40 = arith.cmpi slt, %36, %39 : vector<1x256xi32>
    %c0_22 = arith.constant 0 : index
    %c111 = arith.constant 111 : index
    %41 = vector.load %arg9[%c0_22, %c111] : memref<8x512xbf16, #tpu.memory_space<vmem>>, vector<8x256xbf16>
    %cst_23 = arith.constant 0.000000e+00 : bf16
    %42 = vector.broadcast %cst_23 : bf16 to vector<8x256xbf16>
    %43 = vector.shape_cast %38 : vector<1x256xi1> to vector<1x256xi1>
    %44 = vector.broadcast %43 : vector<1x256xi1> to vector<8x256xi1>
    %45 = arith.select %44, %41, %42 : vector<8x256xi1>, vector<8x256xbf16>
    %c0_24 = arith.constant 0 : index
    %c0_25 = arith.constant 0 : index
    %46 = vector.load %arg11[%c0_24, %c0_25] : memref<72x256xbf16, #tpu.memory_space<vmem>>, vector<8x256xbf16>
    tpu.vector_store %arg11[%c0_24, %c0_25], %45 {strides = array<i32>} : memref<72x256xbf16, #tpu.memory_space<vmem>>, vector<8x256xbf16>,
    %c0_26 = arith.constant 0 : index
    %c112 = arith.constant 112 : index
    %47 = vector.load %arg9[%c0_26, %c112] : memref<8x512xbf16, #tpu.memory_space<vmem>>, vector<8x256xbf16>
    %c8 = arith.constant 8 : index
    %c0_27 = arith.constant 0 : index
    %48 = vector.load %arg11[%c8, %c0_27] : memref<72x256xbf16, #tpu.memory_space<vmem>>, vector<8x256xbf16>
    tpu.vector_store %arg11[%c8, %c0_27], %47 {strides = array<i32>} : memref<72x256xbf16, #tpu.memory_space<vmem>>, vector<8x256xbf16>,
    %c0_28 = arith.constant 0 : index
    %c113 = arith.constant 113 : index
    %49 = vector.load %arg9[%c0_28, %c113] : memref<8x512xbf16, #tpu.memory_space<vmem>>, vector<8x256xbf16>
    %cst_29 = arith.constant 0.000000e+00 : bf16
    %50 = vector.broadcast %cst_29 : bf16 to vector<8x256xbf16>
    %51 = vector.shape_cast %40 : vector<1x256xi1> to vector<1x256xi1>
    %52 = vector.broadcast %51 : vector<1x256xi1> to vector<8x256xi1>
    %53 = arith.select %52, %49, %50 : vector<8x256xi1>, vector<8x256xbf16>
    %c16 = arith.constant 16 : index
    %c0_30 = arith.constant 0 : index
    %54 = vector.load %arg11[%c16, %c0_30] : memref<72x256xbf16, #tpu.memory_space<vmem>>, vector<8x256xbf16>
    tpu.vector_store %arg11[%c16, %c0_30], %53 {strides = array<i32>} : memref<72x256xbf16, #tpu.memory_space<vmem>>, vector<8x256xbf16>,
    %c0_31 = arith.constant 0 : index
    %c127 = arith.constant 127 : index
    %55 = vector.load %arg9[%c0_31, %c127] : memref<8x512xbf16, #tpu.memory_space<vmem>>, vector<8x256xbf16>
    %cst_32 = arith.constant 0.000000e+00 : bf16
    %56 = vector.broadcast %cst_32 : bf16 to vector<8x256xbf16>
    %57 = vector.shape_cast %38 : vector<1x256xi1> to vector<1x256xi1>
    %58 = vector.broadcast %57 : vector<1x256xi1> to vector<8x256xi1>
    %59 = arith.select %58, %55, %56 : vector<8x256xi1>, vector<8x256xbf16>
    %c24 = arith.constant 24 : index
    %c0_33 = arith.constant 0 : index
    %60 = vector.load %arg11[%c24, %c0_33] : memref<72x256xbf16, #tpu.memory_space<vmem>>, vector<8x256xbf16>
    tpu.vector_store %arg11[%c24, %c0_33], %59 {strides = array<i32>} : memref<72x256xbf16, #tpu.memory_space<vmem>>, vector<8x256xbf16>,
    %c0_34 = arith.constant 0 : index
    %c128_35 = arith.constant 128 : index
    %61 = vector.load %arg9[%c0_34, %c128_35] : memref<8x512xbf16, #tpu.memory_space<vmem>>, vector<8x256xbf16>
    %c32 = arith.constant 32 : index
    %c0_36 = arith.constant 0 : index
    %62 = vector.load %arg11[%c32, %c0_36] : memref<72x256xbf16, #tpu.memory_space<vmem>>, vector<8x256xbf16>
    tpu.vector_store %arg11[%c32, %c0_36], %61 {strides = array<i32>} : memref<72x256xbf16, #tpu.memory_space<vmem>>, vector<8x256xbf16>,
    %c0_37 = arith.constant 0 : index
    %c129 = arith.constant 129 : index
    %63 = vector.load %arg9[%c0_37, %c129] : memref<8x512xbf16, #tpu.memory_space<vmem>>, vector<8x256xbf16>
    %cst_38 = arith.constant 0.000000e+00 : bf16
    %64 = vector.broadcast %cst_38 : bf16 to vector<8x256xbf16>
    %65 = vector.shape_cast %40 : vector<1x256xi1> to vector<1x256xi1>
    %66 = vector.broadcast %65 : vector<1x256xi1> to vector<8x256xi1>
    %67 = arith.select %66, %63, %64 : vector<8x256xi1>, vector<8x256xbf16>
    %c40 = arith.constant 40 : index
    %c0_39 = arith.constant 0 : index
    %68 = vector.load %arg11[%c40, %c0_39] : memref<72x256xbf16, #tpu.memory_space<vmem>>, vector<8x256xbf16>
    tpu.vector_store %arg11[%c40, %c0_39], %67 {strides = array<i32>} : memref<72x256xbf16, #tpu.memory_space<vmem>>, vector<8x256xbf16>,
    %c0_40 = arith.constant 0 : index
    %c143 = arith.constant 143 : index
    %69 = vector.load %arg9[%c0_40, %c143] : memref<8x512xbf16, #tpu.memory_space<vmem>>, vector<8x256xbf16>
    %cst_41 = arith.constant 0.000000e+00 : bf16
    %70 = vector.broadcast %cst_41 : bf16 to vector<8x256xbf16>
    %71 = vector.shape_cast %38 : vector<1x256xi1> to vector<1x256xi1>
    %72 = vector.broadcast %71 : vector<1x256xi1> to vector<8x256xi1>
    %73 = arith.select %72, %69, %70 : vector<8x256xi1>, vector<8x256xbf16>
    %c48 = arith.constant 48 : index
    %c0_42 = arith.constant 0 : index
    %74 = vector.load %arg11[%c48, %c0_42] : memref<72x256xbf16, #tpu.memory_space<vmem>>, vector<8x256xbf16>
    tpu.vector_store %arg11[%c48, %c0_42], %73 {strides = array<i32>} : memref<72x256xbf16, #tpu.memory_space<vmem>>, vector<8x256xbf16>,
    %c0_43 = arith.constant 0 : index
    %c144 = arith.constant 144 : index
    %75 = vector.load %arg9[%c0_43, %c144] : memref<8x512xbf16, #tpu.memory_space<vmem>>, vector<8x256xbf16>
    %c56 = arith.constant 56 : index
    %c0_44 = arith.constant 0 : index
    %76 = vector.load %arg11[%c56, %c0_44] : memref<72x256xbf16, #tpu.memory_space<vmem>>, vector<8x256xbf16>
    tpu.vector_store %arg11[%c56, %c0_44], %75 {strides = array<i32>} : memref<72x256xbf16, #tpu.memory_space<vmem>>, vector<8x256xbf16>,
    %c0_45 = arith.constant 0 : index
    %c145 = arith.constant 145 : index
    %77 = vector.load %arg9[%c0_45, %c145] : memref<8x512xbf16, #tpu.memory_space<vmem>>, vector<8x256xbf16>
    %cst_46 = arith.constant 0.000000e+00 : bf16
    %78 = vector.broadcast %cst_46 : bf16 to vector<8x256xbf16>
    %79 = vector.shape_cast %40 : vector<1x256xi1> to vector<1x256xi1>
    %80 = vector.broadcast %79 : vector<1x256xi1> to vector<8x256xi1>
    %81 = arith.select %80, %77, %78 : vector<8x256xi1>, vector<8x256xbf16>
    %c64 = arith.constant 64 : index
    %c0_47 = arith.constant 0 : index
    %82 = vector.load %arg11[%c64, %c0_47] : memref<72x256xbf16, #tpu.memory_space<vmem>>, vector<8x256xbf16>
    tpu.vector_store %arg11[%c64, %c0_47], %81 {strides = array<i32>} : memref<72x256xbf16, #tpu.memory_space<vmem>>, vector<8x256xbf16>,
    %c0_48 = arith.constant 0 : index
    %c0_49 = arith.constant 0 : index
    %83 = vector.load %arg5[%c0_48, %c0_49] : memref<8x72xbf16, #tpu.memory_space<vmem>>, vector<8x72xbf16>
    %c0_50 = arith.constant 0 : index
    %c0_51 = arith.constant 0 : index
    %84 = vector.load %arg11[%c0_50, %c0_51] : memref<72x256xbf16, #tpu.memory_space<vmem>>, vector<72x256xbf16>
    %cst_52 = arith.constant dense<0.000000e+00> : vector<8x256xf32>
    %85 = tpu.matmul %83, %84, %cst_52 {dimension_numbers = #tpu.dot_dimension_numbers<[1], [0], [0], [1], [0, 0, 1, 1], [], []>} : vector<8x72xbf16>, vector<72x256xbf16>, vector<8x256xf32> -> vector<8x256xf32>
    %c0_53 = arith.constant 0 : index
    %c0_54 = arith.constant 0 : index
    %86 = vector.load %arg4[%c0_53, %c0_54] : memref<8x1xf32, #tpu.memory_space<vmem>>, vector<8x1xf32>
    %87 = vector.broadcast %86 : vector<8x1xf32> to vector<8x256xf32>
    %88 = arith.addf %85, %87 : vector<8x256xf32>
    %cst_55 = arith.constant 0.000000e+00 : f32
    %89 = vector.broadcast %cst_55 : f32 to vector<8x256xf32>
    %90 = arith.maximumf %88, %89 : vector<8x256xf32>
    %91 = arith.truncf %90 : vector<8x256xf32> to vector<8x256xbf16>
    %c0_56 = arith.constant 0 : index
    %c128_57 = arith.constant 128 : index
    %92 = vector.load %arg10[%c0_56, %c128_57] : memref<8x512xbf16, #tpu.memory_space<vmem>>, vector<8x256xbf16>
    tpu.vector_store %arg10[%c0_56, %c128_57], %91 {strides = array<i32>} : memref<8x512xbf16, #tpu.memory_space<vmem>>, vector<8x256xbf16>,
    %c0_58 = arith.constant 0 : index
    %c128_59 = arith.constant 128 : index
    %93 = vector.load %arg9[%c0_58, %c128_59] : memref<8x512xbf16, #tpu.memory_space<vmem>>, vector<8x256xbf16>
    %c0_60 = arith.constant 0 : index
    %c0_61 = arith.constant 0 : index
    %94 = vector.load %arg7[%c0_60, %c0_61] : memref<8x8xbf16, #tpu.memory_space<vmem>>, vector<8x8xbf16>
    %cst_62 = arith.constant dense<0.000000e+00> : vector<8x256xf32>
    %95 = tpu.matmul %94, %93, %cst_62 {dimension_numbers = #tpu.dot_dimension_numbers<[1], [0], [0], [1], [0, 0, 1, 1], [], []>} : vector<8x8xbf16>, vector<8x256xbf16>, vector<8x256xf32> -> vector<8x256xf32>
    %96 = tpu.iota {dimensions = array<i32: 1>} : vector<1x256xi32>
    %c16_i32_63 = arith.constant 16 : i32
    %c0_i32_64 = arith.constant 0 : i32
    %97 = arith.cmpi eq, %c16_i32_63, %c0_i32_64 : i32
    %c1_i32_65 = arith.constant 1 : i32
    %98 = arith.select %97, %c1_i32_65, %c16_i32_63 : i32
    %99 = vector.broadcast %98 : i32 to vector<1x256xi32>
    %100 = arith.remsi %96, %99 : vector<1x256xi32>
    %c0_i32_66 = arith.constant 0 : i32
    %101 = vector.broadcast %c0_i32_66 : i32 to vector<1x256xi32>
    %102 = arith.cmpi ne, %100, %101 : vector<1x256xi32>
    %c0_i32_67 = arith.constant 0 : i32
    %103 = vector.broadcast %c0_i32_67 : i32 to vector<1x256xi32>
    %104 = arith.cmpi slt, %100, %103 : vector<1x256xi32>
    %c0_i32_68 = arith.constant 0 : i32
    %105 = arith.cmpi slt, %98, %c0_i32_68 : i32
    %106 = vector.broadcast %105 : i1 to vector<1x256xi1>
    %107 = vector.broadcast %106 : vector<1x256xi1> to vector<1x256xi1>
    %108 = arith.xori %104, %107 : vector<1x256xi1>
    %109 = arith.andi %108, %102 : vector<1x256xi1>
    %110 = vector.broadcast %98 : i32 to vector<1x256xi32>
    %111 = arith.addi %100, %110 : vector<1x256xi32>
    %112 = arith.select %109, %111, %100 : vector<1x256xi1>, vector<1x256xi32>
    %c0_i32_69 = arith.constant 0 : i32
    %113 = vector.broadcast %c0_i32_69 : i32 to vector<1x256xi32>
    %114 = arith.cmpi sgt, %112, %113 : vector<1x256xi32>
    %c15_i32_70 = arith.constant 15 : i32
    %115 = vector.broadcast %c15_i32_70 : i32 to vector<1x256xi32>
    %116 = arith.cmpi slt, %112, %115 : vector<1x256xi32>
    %c0_71 = arith.constant 0 : index
    %c111_72 = arith.constant 111 : index
    %117 = vector.load %arg10[%c0_71, %c111_72] : memref<8x512xbf16, #tpu.memory_space<vmem>>, vector<8x256xbf16>
    %cst_73 = arith.constant 0.000000e+00 : bf16
    %118 = vector.broadcast %cst_73 : bf16 to vector<8x256xbf16>
    %119 = vector.shape_cast %114 : vector<1x256xi1> to vector<1x256xi1>
    %120 = vector.broadcast %119 : vector<1x256xi1> to vector<8x256xi1>
    %121 = arith.select %120, %117, %118 : vector<8x256xi1>, vector<8x256xbf16>
    %c0_74 = arith.constant 0 : index
    %c0_75 = arith.constant 0 : index
    %122 = vector.load %arg11[%c0_74, %c0_75] : memref<72x256xbf16, #tpu.memory_space<vmem>>, vector<8x256xbf16>
    tpu.vector_store %arg11[%c0_74, %c0_75], %121 {strides = array<i32>} : memref<72x256xbf16, #tpu.memory_space<vmem>>, vector<8x256xbf16>,
    %c0_76 = arith.constant 0 : index
    %c112_77 = arith.constant 112 : index
    %123 = vector.load %arg10[%c0_76, %c112_77] : memref<8x512xbf16, #tpu.memory_space<vmem>>, vector<8x256xbf16>
    %c8_78 = arith.constant 8 : index
    %c0_79 = arith.constant 0 : index
    %124 = vector.load %arg11[%c8_78, %c0_79] : memref<72x256xbf16, #tpu.memory_space<vmem>>, vector<8x256xbf16>
    tpu.vector_store %arg11[%c8_78, %c0_79], %123 {strides = array<i32>} : memref<72x256xbf16, #tpu.memory_space<vmem>>, vector<8x256xbf16>,
    %c0_80 = arith.constant 0 : index
    %c113_81 = arith.constant 113 : index
    %125 = vector.load %arg10[%c0_80, %c113_81] : memref<8x512xbf16, #tpu.memory_space<vmem>>, vector<8x256xbf16>
    %cst_82 = arith.constant 0.000000e+00 : bf16
    %126 = vector.broadcast %cst_82 : bf16 to vector<8x256xbf16>
    %127 = vector.shape_cast %116 : vector<1x256xi1> to vector<1x256xi1>
    %128 = vector.broadcast %127 : vector<1x256xi1> to vector<8x256xi1>
    %129 = arith.select %128, %125, %126 : vector<8x256xi1>, vector<8x256xbf16>
    %c16_83 = arith.constant 16 : index
    %c0_84 = arith.constant 0 : index
    %130 = vector.load %arg11[%c16_83, %c0_84] : memref<72x256xbf16, #tpu.memory_space<vmem>>, vector<8x256xbf16>
    tpu.vector_store %arg11[%c16_83, %c0_84], %129 {strides = array<i32>} : memref<72x256xbf16, #tpu.memory_space<vmem>>, vector<8x256xbf16>,
    %c0_85 = arith.constant 0 : index
    %c127_86 = arith.constant 127 : index
    %131 = vector.load %arg10[%c0_85, %c127_86] : memref<8x512xbf16, #tpu.memory_space<vmem>>, vector<8x256xbf16>
    %cst_87 = arith.constant 0.000000e+00 : bf16
    %132 = vector.broadcast %cst_87 : bf16 to vector<8x256xbf16>
    %133 = vector.shape_cast %114 : vector<1x256xi1> to vector<1x256xi1>
    %134 = vector.broadcast %133 : vector<1x256xi1> to vector<8x256xi1>
    %135 = arith.select %134, %131, %132 : vector<8x256xi1>, vector<8x256xbf16>
    %c24_88 = arith.constant 24 : index
    %c0_89 = arith.constant 0 : index
    %136 = vector.load %arg11[%c24_88, %c0_89] : memref<72x256xbf16, #tpu.memory_space<vmem>>, vector<8x256xbf16>
    tpu.vector_store %arg11[%c24_88, %c0_89], %135 {strides = array<i32>} : memref<72x256xbf16, #tpu.memory_space<vmem>>, vector<8x256xbf16>,
    %c0_90 = arith.constant 0 : index
    %c128_91 = arith.constant 128 : index
    %137 = vector.load %arg10[%c0_90, %c128_91] : memref<8x512xbf16, #tpu.memory_space<vmem>>, vector<8x256xbf16>
    %c32_92 = arith.constant 32 : index
    %c0_93 = arith.constant 0 : index
    %138 = vector.load %arg11[%c32_92, %c0_93] : memref<72x256xbf16, #tpu.memory_space<vmem>>, vector<8x256xbf16>
    tpu.vector_store %arg11[%c32_92, %c0_93], %137 {strides = array<i32>} : memref<72x256xbf16, #tpu.memory_space<vmem>>, vector<8x256xbf16>,
    %c0_94 = arith.constant 0 : index
    %c129_95 = arith.constant 129 : index
    %139 = vector.load %arg10[%c0_94, %c129_95] : memref<8x512xbf16, #tpu.memory_space<vmem>>, vector<8x256xbf16>
    %cst_96 = arith.constant 0.000000e+00 : bf16
    %140 = vector.broadcast %cst_96 : bf16 to vector<8x256xbf16>
    %141 = vector.shape_cast %116 : vector<1x256xi1> to vector<1x256xi1>
    %142 = vector.broadcast %141 : vector<1x256xi1> to vector<8x256xi1>
    %143 = arith.select %142, %139, %140 : vector<8x256xi1>, vector<8x256xbf16>
    %c40_97 = arith.constant 40 : index
    %c0_98 = arith.constant 0 : index
    %144 = vector.load %arg11[%c40_97, %c0_98] : memref<72x256xbf16, #tpu.memory_space<vmem>>, vector<8x256xbf16>
    tpu.vector_store %arg11[%c40_97, %c0_98], %143 {strides = array<i32>} : memref<72x256xbf16, #tpu.memory_space<vmem>>, vector<8x256xbf16>,
    %c0_99 = arith.constant 0 : index
    %c143_100 = arith.constant 143 : index
    %145 = vector.load %arg10[%c0_99, %c143_100] : memref<8x512xbf16, #tpu.memory_space<vmem>>, vector<8x256xbf16>
    %cst_101 = arith.constant 0.000000e+00 : bf16
    %146 = vector.broadcast %cst_101 : bf16 to vector<8x256xbf16>
    %147 = vector.shape_cast %114 : vector<1x256xi1> to vector<1x256xi1>
    %148 = vector.broadcast %147 : vector<1x256xi1> to vector<8x256xi1>
    %149 = arith.select %148, %145, %146 : vector<8x256xi1>, vector<8x256xbf16>
    %c48_102 = arith.constant 48 : index
    %c0_103 = arith.constant 0 : index
    %150 = vector.load %arg11[%c48_102, %c0_103] : memref<72x256xbf16, #tpu.memory_space<vmem>>, vector<8x256xbf16>
    tpu.vector_store %arg11[%c48_102, %c0_103], %149 {strides = array<i32>} : memref<72x256xbf16, #tpu.memory_space<vmem>>, vector<8x256xbf16>,
    %c0_104 = arith.constant 0 : index
    %c144_105 = arith.constant 144 : index
    %151 = vector.load %arg10[%c0_104, %c144_105] : memref<8x512xbf16, #tpu.memory_space<vmem>>, vector<8x256xbf16>
    %c56_106 = arith.constant 56 : index
    %c0_107 = arith.constant 0 : index
    %152 = vector.load %arg11[%c56_106, %c0_107] : memref<72x256xbf16, #tpu.memory_space<vmem>>, vector<8x256xbf16>
    tpu.vector_store %arg11[%c56_106, %c0_107], %151 {strides = array<i32>} : memref<72x256xbf16, #tpu.memory_space<vmem>>, vector<8x256xbf16>,
    %c0_108 = arith.constant 0 : index
    %c145_109 = arith.constant 145 : index
    %153 = vector.load %arg10[%c0_108, %c145_109] : memref<8x512xbf16, #tpu.memory_space<vmem>>, vector<8x256xbf16>
    %cst_110 = arith.constant 0.000000e+00 : bf16
    %154 = vector.broadcast %cst_110 : bf16 to vector<8x256xbf16>
    %155 = vector.shape_cast %116 : vector<1x256xi1> to vector<1x256xi1>
    %156 = vector.broadcast %155 : vector<1x256xi1> to vector<8x256xi1>
    %157 = arith.select %156, %153, %154 : vector<8x256xi1>, vector<8x256xbf16>
    %c64_111 = arith.constant 64 : index
    %c0_112 = arith.constant 0 : index
    %158 = vector.load %arg11[%c64_111, %c0_112] : memref<72x256xbf16, #tpu.memory_space<vmem>>, vector<8x256xbf16>
    tpu.vector_store %arg11[%c64_111, %c0_112], %157 {strides = array<i32>} : memref<72x256xbf16, #tpu.memory_space<vmem>>, vector<8x256xbf16>,
    %c0_113 = arith.constant 0 : index
    %c0_114 = arith.constant 0 : index
    %159 = vector.load %arg6[%c0_113, %c0_114] : memref<8x72xbf16, #tpu.memory_space<vmem>>, vector<8x72xbf16>
    %c0_115 = arith.constant 0 : index
    %c0_116 = arith.constant 0 : index
    %160 = vector.load %arg11[%c0_115, %c0_116] : memref<72x256xbf16, #tpu.memory_space<vmem>>, vector<72x256xbf16>
    %cst_117 = arith.constant dense<0.000000e+00> : vector<8x256xf32>
    %161 = tpu.matmul %159, %160, %cst_117 {dimension_numbers = #tpu.dot_dimension_numbers<[1], [0], [0], [1], [0, 0, 1, 1], [], []>} : vector<8x72xbf16>, vector<72x256xbf16>, vector<8x256xf32> -> vector<8x256xf32>
    %162 = arith.addf %161, %95 : vector<8x256xf32>
    %c0_118 = arith.constant 0 : index
    %c0_119 = arith.constant 0 : index
    %c0_120 = arith.constant 0 : index
    %163 = vector.load %arg8[%c0_118, %c0_119, %c0_120] : memref<1x8x256xf32, #tpu.memory_space<vmem>>, vector<1x8x256xf32>
    %164 = vector.shape_cast %163 : vector<1x8x256xf32> to vector<8x256xf32>
    %165 = vector.shape_cast %162 : vector<8x256xf32> to vector<1x8x256xf32>
    tpu.vector_store %arg8[%c0_118, %c0_119, %c0_120], %165 {strides = array<i32>} : memref<1x8x256xf32, #tpu.memory_space<vmem>>, vector<1x8x256xf32>,
    return
  }
  func.func @transform_0(%arg0: i32) -> (i32, i32, i32) {
    %c0_i32 = arith.constant 0 : i32
    %c0_i32_0 = arith.constant 0 : i32
    %c0_i32_1 = arith.constant 0 : i32
    return %arg0, %c0_i32, %c0_i32_0 : i32, i32, i32
  }
  func.func @transform_1(%arg0: i32) -> (i32, i32) {
    %c0_i32 = arith.constant 0 : i32
    %c0_i32_0 = arith.constant 0 : i32
    %c0_i32_1 = arith.constant 0 : i32
    return %c0_i32, %c0_i32_0 : i32, i32
  }
  func.func @transform_2(%arg0: i32) -> (i32, i32) {
    %c0_i32 = arith.constant 0 : i32
    %c0_i32_0 = arith.constant 0 : i32
    %c0_i32_1 = arith.constant 0 : i32
    return %c0_i32, %c0_i32_0 : i32, i32
  }
  func.func @transform_3(%arg0: i32) -> (i32, i32) {
    %c0_i32 = arith.constant 0 : i32
    %c0_i32_0 = arith.constant 0 : i32
    %c0_i32_1 = arith.constant 0 : i32
    return %c0_i32, %c0_i32_0 : i32, i32
  }
  func.func @transform_4(%arg0: i32) -> (i32, i32) {
    %c0_i32 = arith.constant 0 : i32
    %c0_i32_0 = arith.constant 0 : i32
    %c0_i32_1 = arith.constant 0 : i32
    return %c0_i32, %c0_i32_0 : i32, i32
  }
  func.func @transform_5(%arg0: i32) -> (i32, i32) {
    %c0_i32 = arith.constant 0 : i32
    %c0_i32_0 = arith.constant 0 : i32
    %c0_i32_1 = arith.constant 0 : i32
    return %c0_i32, %c0_i32_0 : i32, i32
  }
  func.func @transform_6(%arg0: i32) -> (i32, i32) {
    %c0_i32 = arith.constant 0 : i32
    %c0_i32_0 = arith.constant 0 : i32
    %c0_i32_1 = arith.constant 0 : i32
    return %c0_i32, %c0_i32_0 : i32, i32
  }
  func.func @transform_7(%arg0: i32) -> (i32, i32, i32) {
    %c0_i32 = arith.constant 0 : i32
    %c0_i32_0 = arith.constant 0 : i32
    %c0_i32_1 = arith.constant 0 : i32
    return %arg0, %c0_i32, %c0_i32_0 : i32, i32, i32
  }
}

</mosaic_0001>

<llo_original>
// kernel: _lambda_.2
$region0: #{_lambda_.2}
  #allocation0 [shape = 'u32[]', space=smem, size = 0x4, offset = 0x4, fixed_abs, tag = 'smem constant byte address 0x4 - core index']
  #allocation1 [shape = 'u32[144,128]{1,0:T(1,128)}', space=vmem, size = 0x12000, scoped, tag = 'internal scratch']
  #allocation2 [shape = 'bf16[8,512]{1,0:T(8,128)(2,1)}', space=vmem, size = 0x2000, scoped, tag = 'scratch operand']
  #allocation3 [shape = 'bf16[8,512]{1,0:T(8,128)(2,1)}', space=vmem, size = 0x2000, scoped, tag = 'scratch operand']
  #allocation4 [shape = 'bf16[72,256]{1,0:T(8,128)(2,1)}', space=vmem, size = 0x9000, scoped, tag = 'scratch operand']
  %s0 = inlined_call_operand.vmem [shape: f32[2,4,256], index: 0, kind: input, shape index: {}]
  %s1 = inlined_call_operand.vmem [shape: f32[4,1], index: 1, kind: input, shape index: {}]
  %s2 = inlined_call_operand.vmem [shape: f32[4,1], index: 2, kind: input, shape index: {}]
  %s3 = inlined_call_operand.vmem [shape: f32[8,1], index: 3, kind: input, shape index: {}]
  %s4 = inlined_call_operand.vmem [shape: bf16[8,72], index: 4, kind: input, shape index: {}]
  %s5 = inlined_call_operand.vmem [shape: bf16[8,72], index: 5, kind: input, shape index: {}]
  %s6 = inlined_call_operand.vmem [shape: bf16[8,8], index: 6, kind: input, shape index: {}]
  %s7 = inlined_call_operand.vmem [shape: f32[2,8,256], index: 7, kind: output, shape index: {}]
  %s8 = sld [smem:[#allocation0]]
  $region61: #{_lambda_.2} parent=0
    _
  %s10 = ssub.s32 1, %s8
  %s11 = scalar_select 0, %s10, %s8
  loop: start=0, step=1, limit=4
  $region2: #{_lambda_.2} parent=0 // loop_pre_header
    _
  $region3: #{_lambda_.2} parent=0 // loop_header
    %s13 = sphi 0, %s17
    %p14 = scmp.ge.s32.totalorder %s13, 4
    %s23 = sphi 0, %s25
    %s26 = sphi 0, %s23
    %s27 = sphi 0, %s26
    %s43 = sphi 0, %s27
    %s47 = sphi 0, %s47
    %s49 = sphi 0, %s47
    %s50 = sphi 0, %s49
    %s64 = sphi 0, %s50
    %s68 = sphi 0, %s68
    %s70 = sphi 0, %s68
    %s71 = sphi 0, %s70
    %s85 = sphi 0, %s71
    %s89 = sphi 0, %s89
    %s91 = sphi 0, %s89
    %s92 = sphi 0, %s91
    %s106 = sphi 0, %s92
    %s110 = sphi 0, %s110
    %s112 = sphi 0, %s110
    %s113 = sphi 0, %s112
    %s127 = sphi 0, %s113
    %s131 = sphi 0, %s131
    %s133 = sphi 0, %s131
    %s134 = sphi 0, %s133
    %s148 = sphi 0, %s134
    %s152 = sphi 0, %s152
    %s154 = sphi 0, %s152
    %s155 = sphi 0, %s154
    %s169 = sphi 0, %s155
    %s175 = sphi 0, %s177
    %s178 = sphi 0, %s175
    %s179 = sphi 0, %s178
    %s195 = sphi 0, %s179
  $region4: #{_lambda_.2} parent=0 // loop_header_branch
    %16 = sbr.rel (%p14) target = $region8
  $region5: #{_lambda_.2} parent=0 // loop_body
    %s18 = ssub.s32 %s13, 1
    %s19 = ssub.s32 %s13, 2
    %s20 = sadd.s32 %s13, 1
    %s21 = ssub.s32 %s13, %s20
    %p22 = scmp.eq.s32.totalorder %s21, 0
    %s24 = sadd.s32 %s23, 1
    %s25 = scalar_select %p22, %s23, %s24
    %p28 = pneg %p22
    %p29 = scmp.eq.s32.totalorder %s13, 1
    %p30 = por %p28, %p29
    %p31 = scmp.ne.s32.totalorder %s23, %s26
    %p32 = scmp.eq.s32.totalorder %s13, 0
    %p33 = por %p31, %p32
    %p34 = scmp.ne.s32.totalorder %s23, %s26
    %p35 = scmp.eq.s32.totalorder %s18, 1
    %p36 = por %p34, %p35
    %p37 = scmp.ne.s32.totalorder %s26, %s27
    %p38 = scmp.eq.s32.totalorder %s18, 0
    %p39 = por %p37, %p38
    %p40 = scmp.ne.s32.totalorder %s26, %s27
    %p41 = scmp.eq.s32.totalorder %s19, 1
    %p42 = por %p40, %p41
    %p44 = scmp.ne.s32.totalorder %s27, %s43
    %p45 = scmp.eq.s32.totalorder %s19, 0
    %p46 = por %p44, %p45
    %s48 = sadd.s32 %s47, 1
    %p51 = scmp.eq.s32.totalorder %s13, 1
    %p52 = scmp.ne.s32.totalorder %s47, %s49
    %p53 = scmp.eq.s32.totalorder %s13, 0
    %p54 = por %p52, %p53
    %p55 = scmp.ne.s32.totalorder %s47, %s49
    %p56 = scmp.eq.s32.totalorder %s18, 1
    %p57 = por %p55, %p56
    %p58 = scmp.ne.s32.totalorder %s49, %s50
    %p59 = scmp.eq.s32.totalorder %s18, 0
    %p60 = por %p58, %p59
    %p61 = scmp.ne.s32.totalorder %s49, %s50
    %p62 = scmp.eq.s32.totalorder %s19, 1
    %p63 = por %p61, %p62
    %p65 = scmp.ne.s32.totalorder %s50, %s64
    %p66 = scmp.eq.s32.totalorder %s19, 0
    %p67 = por %p65, %p66
    %s69 = sadd.s32 %s68, 1
    %p72 = scmp.eq.s32.totalorder %s13, 1
    %p73 = scmp.ne.s32.totalorder %s68, %s70
    %p74 = scmp.eq.s32.totalorder %s13, 0
    %p75 = por %p73, %p74
    %p76 = scmp.ne.s32.totalorder %s68, %s70
    %p77 = scmp.eq.s32.totalorder %s18, 1
    %p78 = por %p76, %p77
    %p79 = scmp.ne.s32.totalorder %s70, %s71
    %p80 = scmp.eq.s32.totalorder %s18, 0
    %p81 = por %p79, %p80
    %p82 = scmp.ne.s32.totalorder %s70, %s71
    %p83 = scmp.eq.s32.totalorder %s19, 1
    %p84 = por %p82, %p83
    %p86 = scmp.ne.s32.totalorder %s71, %s85
    %p87 = scmp.eq.s32.totalorder %s19, 0
    %p88 = por %p86, %p87
    %s90 = sadd.s32 %s89, 1
    %p93 = scmp.eq.s32.totalorder %s13, 1
    %p94 = scmp.ne.s32.totalorder %s89, %s91
    %p95 = scmp.eq.s32.totalorder %s13, 0
    %p96 = por %p94, %p95
    %p97 = scmp.ne.s32.totalorder %s89, %s91
    %p98 = scmp.eq.s32.totalorder %s18, 1
    %p99 = por %p97, %p98
    %p100 = scmp.ne.s32.totalorder %s91, %s92
    %p101 = scmp.eq.s32.totalorder %s18, 0
    %p102 = por %p100, %p101
    %p103 = scmp.ne.s32.totalorder %s91, %s92
    %p104 = scmp.eq.s32.totalorder %s19, 1
    %p105 = por %p103, %p104
    %p107 = scmp.ne.s32.totalorder %s92, %s106
    %p108 = scmp.eq.s32.totalorder %s19, 0
    %p109 = por %p107, %p108
    %s111 = sadd.s32 %s110, 1
    %p114 = scmp.eq.s32.totalorder %s13, 1
    %p115 = scmp.ne.s32.totalorder %s110, %s112
    %p116 = scmp.eq.s32.totalorder %s13, 0
    %p117 = por %p115, %p116
    %p118 = scmp.ne.s32.totalorder %s110, %s112
    %p119 = scmp.eq.s32.totalorder %s18, 1
    %p120 = por %p118, %p119
    %p121 = scmp.ne.s32.totalorder %s112, %s113
    %p122 = scmp.eq.s32.totalorder %s18, 0
    %p123 = por %p121, %p122
    %p124 = scmp.ne.s32.totalorder %s112, %s113
    %p125 = scmp.eq.s32.totalorder %s19, 1
    %p126 = por %p124, %p125
    %p128 = scmp.ne.s32.totalorder %s113, %s127
    %p129 = scmp.eq.s32.totalorder %s19, 0
    %p130 = por %p128, %p129
    %s132 = sadd.s32 %s131, 1
    %p135 = scmp.eq.s32.totalorder %s13, 1
    %p136 = scmp.ne.s32.totalorder %s131, %s133
    %p137 = scmp.eq.s32.totalorder %s13, 0
    %p138 = por %p136, %p137
    %p139 = scmp.ne.s32.totalorder %s131, %s133
    %p140 = scmp.eq.s32.totalorder %s18, 1
    %p141 = por %p139, %p140
    %p142 = scmp.ne.s32.totalorder %s133, %s134
    %p143 = scmp.eq.s32.totalorder %s18, 0
    %p144 = por %p142, %p143
    %p145 = scmp.ne.s32.totalorder %s133, %s134
    %p146 = scmp.eq.s32.totalorder %s19, 1
    %p147 = por %p145, %p146
    %p149 = scmp.ne.s32.totalorder %s134, %s148
    %p150 = scmp.eq.s32.totalorder %s19, 0
    %p151 = por %p149, %p150
    %s153 = sadd.s32 %s152, 1
    %p156 = scmp.eq.s32.totalorder %s13, 1
    %p157 = scmp.ne.s32.totalorder %s152, %s154
    %p158 = scmp.eq.s32.totalorder %s13, 0
    %p159 = por %p157, %p158
    %p160 = scmp.ne.s32.totalorder %s152, %s154
    %p161 = scmp.eq.s32.totalorder %s18, 1
    %p162 = por %p160, %p161
    %p163 = scmp.ne.s32.totalorder %s154, %s155
    %p164 = scmp.eq.s32.totalorder %s18, 0
    %p165 = por %p163, %p164
    %p166 = scmp.ne.s32.totalorder %s154, %s155
    %p167 = scmp.eq.s32.totalorder %s19, 1
    %p168 = por %p166, %p167
    %p170 = scmp.ne.s32.totalorder %s155, %s169
    %p171 = scmp.eq.s32.totalorder %s19, 0
    %p172 = por %p170, %p171
    %s173 = ssub.s32 %s13, %s20
    %p174 = scmp.eq.s32.totalorder %s173, 0
    %s176 = sadd.s32 %s175, 1
    %s177 = scalar_select %p174, %s175, %s176
    %p180 = pneg %p174
    %p181 = scmp.eq.s32.totalorder %s13, 1
    %p182 = por %p180, %p181
    %p183 = scmp.ne.s32.totalorder %s175, %s178
    %p184 = scmp.eq.s32.totalorder %s13, 0
    %p185 = por %p183, %p184
    %p186 = scmp.ne.s32.totalorder %s175, %s178
    %p187 = scmp.eq.s32.totalorder %s18, 1
    %p188 = por %p186, %p187
    %p189 = scmp.ne.s32.totalorder %s178, %s179
    %p190 = scmp.eq.s32.totalorder %s18, 0
    %p191 = por %p189, %p190
    %p192 = scmp.ne.s32.totalorder %s178, %s179
    %p193 = scmp.eq.s32.totalorder %s19, 1
    %p194 = por %p192, %p193
    %p196 = scmp.ne.s32.totalorder %s179, %s195
    %p197 = scmp.eq.s32.totalorder %s19, 0
    %p198 = por %p196, %p197
    %p199 = scmp.le.s32.totalorder 1, %s13
    %p200 = scmp.lt.s32.totalorder %s13, 3
    %p201 = pnand %p199, %p200
    %p202 = pneg %p201
    // Predicated region
    $region9: #{_lambda_.2} parent=5 // pred_check
      _
    $region10: #{_lambda_.2} parent=5 // pred_check_branch
      %204 = sbr.rel (%p201) target = $region12
    $region11: #{_lambda_.2} parent=5 // pred_region
      %s205 = ssub.s32 %s13, 1
      // Predicated region
      $region13: #{_lambda_.2} parent=11 // pred_check
        %p206 = pneg %p60
      $region14: #{_lambda_.2} parent=11 // pred_check_branch
        %208 = sbr.rel (%p206) target = $region16
      $region15: #{_lambda_.2} parent=11 // pred_region
        _
      $region16: #{_lambda_.2} parent=11 // pred_fallthru
        _
      // Predicated region
      $region17: #{_lambda_.2} parent=11 // pred_check
        %p209 = pneg %p81
      $region18: #{_lambda_.2} parent=11 // pred_check_branch
        %211 = sbr.rel (%p209) target = $region20
      $region19: #{_lambda_.2} parent=11 // pred_region
        _
      $region20: #{_lambda_.2} parent=11 // pred_fallthru
        _
      // Predicated region
      $region21: #{_lambda_.2} parent=11 // pred_check
        %p212 = pneg %p102
      $region22: #{_lambda_.2} parent=11 // pred_check_branch
        %214 = sbr.rel (%p212) target = $region24
      $region23: #{_lambda_.2} parent=11 // pred_region
        _
      $region24: #{_lambda_.2} parent=11 // pred_fallthru
        _
      // Predicated region
      $region25: #{_lambda_.2} parent=11 // pred_check
        %p215 = pneg %p123
      $region26: #{_lambda_.2} parent=11 // pred_check_branch
        %217 = sbr.rel (%p215) target = $region28
      $region27: #{_lambda_.2} parent=11 // pred_region
        _
      $region28: #{_lambda_.2} parent=11 // pred_fallthru
        _
      // Predicated region
      $region29: #{_lambda_.2} parent=11 // pred_check
        %p218 = pneg %p144
      $region30: #{_lambda_.2} parent=11 // pred_check_branch
        %220 = sbr.rel (%p218) target = $region32
      $region31: #{_lambda_.2} parent=11 // pred_region
        _
      $region32: #{_lambda_.2} parent=11 // pred_fallthru
        _
      // Predicated region
      $region33: #{_lambda_.2} parent=11 // pred_check
        %p221 = pneg %p165
      $region34: #{_lambda_.2} parent=11 // pred_check_branch
        %223 = sbr.rel (%p221) target = $region36
      $region35: #{_lambda_.2} parent=11 // pred_region
        _
      $region36: #{_lambda_.2} parent=11 // pred_fallthru
        _
    $region12: #{_lambda_.2} parent=5 // pred_fallthru
      _
    %p224 = scmp.lt.s32.totalorder %s13, 2
    // Predicated region
    $region37: #{_lambda_.2} parent=5 // pred_check
      %p225 = pneg %p224
    $region38: #{_lambda_.2} parent=5 // pred_check_branch
      %227 = sbr.rel (%p225) target = $region40
    $region39: #{_lambda_.2} parent=5 // pred_region
      // Predicated region
      $region41: #{_lambda_.2} parent=39 // pred_check
        %p228 = pneg %p33
      $region42: #{_lambda_.2} parent=39 // pred_check_branch
        %230 = sbr.rel (%p228) target = $region44
      $region43: #{_lambda_.2} parent=39 // pred_region
        %p231 = scmp.lt.s32.totalorder %s13, 1
        %s232 = scalar_select %p231, %s13, 1
        %s233 = smul.addr %s232, 2
        %s234 = smul.addr %s233, 4
        %s235 = scalar_lea.vmem %s0, %s234
      $region44: #{_lambda_.2} parent=39 // pred_fallthru
        _
    $region40: #{_lambda_.2} parent=5 // pred_fallthru
      _
    %p236 = scmp.le.s32.totalorder 1, %s13
    %p237 = scmp.lt.s32.totalorder %s13, 3
    %p238 = pnand %p236, %p237
    %p239 = pneg %p238
    // Predicated region
    $region45: #{_lambda_.2} parent=5 // pred_check
      _
    $region46: #{_lambda_.2} parent=5 // pred_check_branch
      %241 = sbr.rel (%p238) target = $region48
    $region47: #{_lambda_.2} parent=5 // pred_region
      %s242 = ssub.s32 %s13, 1
      %p243 = scmp.lt.s32.totalorder %s18, 1
      %s244 = scalar_select %p243, %s18, 1
      %s245 = smul.addr %s244, 2
      %s246 = smul.addr %s245, 4
      %s247 = scalar_lea.vmem %s0, %s246
      %p248 = pneg %p39
      %p249 = pneg %p36
      %p250 = pneg %p60
      %p251 = pneg %p57
      %p252 = pneg %p81
      %p253 = pneg %p78
      %p254 = pneg %p102
      %p255 = pneg %p99
      %p256 = pneg %p123
      %p257 = pneg %p120
      %p258 = pneg %p144
      %p259 = pneg %p141
      %p260 = pneg %p165
      %p261 = pneg %p162
      %p262 = pneg %p191
      %p263 = pneg %p188
      %p264 = scmp.lt.s32.totalorder %s18, 1
      %s265 = scalar_select %p264, %s18, 1
      %s266 = smul.addr %s265, 2
      %s267 = smul.addr %s266, 8
      %s268 = scalar_lea.vmem %s7, %s267
      %p269 = scmp.lt.s32.totalorder %s18, 1
      %s270 = scalar_select %p269, %s18, 1
      %s271 = smul.addr %s270, 2
      %s272 = smul.addr %s271, 4
      %s273 = scalar_lea.vmem %s0, %s272
      %p274 = scmp.lt.s32.totalorder %s18, 1
      %s275 = scalar_select %p274, %s18, 1
      %s276 = smul.addr %s275, 2
      %s277 = smul.addr %s276, 8
      %s278 = scalar_lea.vmem %s7, %s277
      %282 = vst [vmem:[#allocation2] sm:$0xf] 0
      %283 = vst [vmem:[#allocation2 + $0xc] sm:$0xf] 0
      %284 = vst [vmem:[#allocation2 + $0x4] sm:$0xcc] 0
      %285 = vst [vmem:[#allocation3] sm:$0xf] 0
      %286 = vst [vmem:[#allocation3 + $0xc] sm:$0xf] 0
      %v287 = vld [vmem:[%s273] sm:$0xff]
      %v288 = vld [vmem:[%s1] sm:$0xf]
      %290 = vset.pattern.permute.xlu0 0
      %291 = vperm.xlu0 %290, %v288
      %v292 = vpop.permute.xlu0 %291
      %v294 = vunpack.c.l.s4 839922192
      %v295 = vunpack.c.0.s8 %v294
      %v296 = vlaneseq
      %v297 = vshrl.u32 %v296, 7
      %v298 = vsub.s32 %v295, %v297
      %v299 = vrot.slane %v292, %v298
      %v301 = vmul.f32 %v287, %v299
      %v302 = vld [vmem:[%s2] sm:$0xf]
      %304 = vset.pattern.permute.xlu0 0
      %305 = vperm.xlu0 %304, %v302
      %v306 = vpop.permute.xlu0 %305
      %v308 = vunpack.c.l.s4 839922192
      %v309 = vunpack.c.0.s8 %v308
      %v310 = vlaneseq
      %v311 = vshrl.u32 %v310, 7
      %v312 = vsub.s32 %v309, %v311
      %v313 = vrot.slane %v306, %v312
      %v315 = vadd.f32 %v301, %v313
      %v316 = vmax.f32 %v315, 0.0
      %v318 = vcombine.high %v316, %v316
      %v320 = vpack.c.bf16 %v316, %v316
      %v321 = vpack.c.bf16 %v318, %v318
      %v324 = vunpack.c.l.b16 %v320
      %v325 = vunpack.c.l.b16 %v321
      %v326 = vpack.c.b16 %v325, %v324
      %328 = vst [vmem:[#allocation2 + $0x4] sm:$0x33] %v326
      %v329 = vlaneseq
      %v330 = vand.u32 %v329, 127
      %v331 = vadd.s32 %v330, 128
      %vm332 = vcmp.lt.s32.totalorder %v330, 0
      %v333 = vsub.s32 0, %v330
      %v334 = vsel %vm332, %v333, %v330
      %v335 = vshrl.u32 %v334, 4
      %v336 = vand.u32 %v334, 15
      %v337 = vsub.s32 0, %v336
      %v338 = vsel %vm332, %v337, %v336
      %vm339 = vcmp.lt.s32.totalorder %v331, 0
      %v340 = vsub.s32 0, %v331
      %v341 = vsel %vm339, %v340, %v331
      %v342 = vshrl.u32 %v341, 4
      %v343 = vand.u32 %v341, 15
      %v344 = vsub.s32 0, %v343
      %v345 = vsel %vm339, %v344, %v343
      %vm346 = vcmp.ne.s32.totalorder %v338, 0
      %vm347 = vcmp.ne.s32.totalorder %v345, 0
      %vm348 = vcmp.lt.s32.totalorder %v338, 0
      %vm349 = vcmp.lt.s32.totalorder %v345, 0
      %vm350 = vmand %vm348, %vm346
      %vm351 = vmand %vm349, %vm347
      %v352 = vadd.s32 %v338, 16
      %v353 = vadd.s32 %v345, 16
      %v354 = vsel %vm350, %v352, %v338
      %v355 = vsel %vm351, %v353, %v345
      %vm356 = vcmp.gt.s32.totalorder %v354, 0
      %vm357 = vcmp.gt.s32.totalorder %v355, 0
      %vm358 = vcmp.lt.s32.totalorder %v354, 15
      %vm359 = vcmp.lt.s32.totalorder %v355, 15
      %v360 = vld [vmem:[#allocation2] sm:$0xff]
      %v361 = vld [vmem:[#allocation2 + $0x8] sm:$0xf]
      %v362 = vsel %vm356, 1, 0
      %v363 = vsel %vm357, 1, 0
      %vm364 = vcmp.eq.s32.totalorder %v362, 1
      %vm365 = vcmp.eq.s32.totalorder %v363, 1
      %vm366 = vmpackc.low %vm365, %vm364
      %v367 = vsel %vm366, 65537, 0
      %368 = vrot.lane.b32.xlu0 %v367, 111
      %v369 = vpop.permute.xlu0 %368
      %v370 = vrot.slane %v369, 4
      %vm371 = vcmask 908288
      %v372 = vsel %vm371, %v370, %v369
      %vm373 = vcmp.ne.s16.totalorder %v372, 0
      %vm374 = vcmp.ne.s16.totalorder %v370, 0
      %v375 = vsel %vm373, %v360, 0
      %v376 = vsel %vm374, %v361, 0
      %379 = vrot.lane.b32.xlu0 %v375, 17
      %v380 = vpop.permute.xlu0 %379
      %381 = vrot.lane.b32.xlu0 %v376, 17
      %v382 = vpop.permute.xlu0 %381
      %v383 = vrot.slane %v380, 4
      %v384 = vrot.slane %v382, 4
      %vm385 = vcmask 1043456
      %v386 = vsel %vm385, %v383, %v384
      %vm387 = vcmask 138240
      %v388 = vsel %vm387, %v380, %v386
      %390 = vst [vmem:[#allocation4] sm:$0xff] %v388
      %v391 = vld [vmem:[#allocation2] sm:$0xff]
      %v392 = vld [vmem:[#allocation2 + $0x8] sm:$0xf]
      %395 = vrot.lane.b32.xlu0 %v391, 16
      %v396 = vpop.permute.xlu0 %395
      %397 = vrot.lane.b32.xlu0 %v392, 16
      %v398 = vpop.permute.xlu0 %397
      %v399 = vrot.slane %v396, 4
      %v400 = vrot.slane %v398, 4
      %v401 = vsel %vm385, %v399, %v400
      %vm402 = vcmask 130048
      %v403 = vsel %vm402, %v396, %v401
      %405 = vst [vmem:[#allocation4 + $0x8] sm:$0xff] %v403
      %v406 = vld [vmem:[#allocation2] sm:$0xff]
      %v407 = vld [vmem:[#allocation2 + $0x8] sm:$0xf]
      %v408 = vsel %vm358, 1, 0
      %v409 = vsel %vm359, 1, 0
      %vm410 = vcmp.eq.s32.totalorder %v408, 1
      %vm411 = vcmp.eq.s32.totalorder %v409, 1
      %vm412 = vmpackc.low %vm411, %vm410
      %v413 = vsel %vm412, 65537, 0
      %414 = vrot.lane.b32.xlu0 %v413, 113
      %v415 = vpop.permute.xlu0 %414
      %v416 = vrot.slane %v415, 4
      %vm417 = vcmask 924672
      %v418 = vsel %vm417, %v416, %v415
      %vm419 = vcmp.ne.s16.totalorder %v418, 0
      %vm420 = vcmp.ne.s16.totalorder %v416, 0
      %v421 = vsel %vm419, %v406, 0
      %v422 = vsel %vm420, %v407, 0
      %425 = vrot.lane.b32.xlu0 %v421, 15
      %v426 = vpop.permute.xlu0 %425
      %427 = vrot.lane.b32.xlu0 %v422, 15
      %v428 = vpop.permute.xlu0 %427
      %v429 = vrot.slane %v426, 4
      %v430 = vrot.slane %v428, 4
      %v431 = vsel %vm385, %v429, %v430
      %vm432 = vcmask 121856
      %v433 = vsel %vm432, %v426, %v431
      %435 = vst [vmem:[#allocation4 + $0x10] sm:$0xff] %v433
      %v436 = vld [vmem:[#allocation2] sm:$0xff]
      %v437 = vld [vmem:[#allocation2 + $0x8] sm:$0xf]
      %438 = vrot.lane.b32.xlu0 %v367, 127
      %v439 = vpop.permute.xlu0 %438
      %v440 = vrot.slane %v439, 4
      %vm441 = vcmask 1039360
      %v442 = vsel %vm441, %v440, %v439
      %vm443 = vcmp.ne.s16.totalorder %v442, 0
      %vm444 = vcmp.ne.s16.totalorder %v440, 0
      %v445 = vsel %vm443, %v436, 0
      %v446 = vsel %vm444, %v437, 0
      %449 = vrot.lane.b32.xlu0 %v445, 1
      %v450 = vpop.permute.xlu0 %449
      %451 = vrot.lane.b32.xlu0 %v446, 1
      %v452 = vpop.permute.xlu0 %451
      %v453 = vrot.slane %v450, 4
      %v454 = vrot.slane %v452, 4
      %v455 = vsel %vm385, %v453, %v454
      %vm456 = vcmask 7168
      %v457 = vsel %vm456, %v450, %v455
      %459 = vst [vmem:[#allocation4 + $0x18] sm:$0xff] %v457
      %v460 = vld [vmem:[#allocation2 + $0x4] sm:$0xff]
      %461 = vst [vmem:[#allocation4 + $0x20] sm:$0xff] %v460
      %v462 = vld [vmem:[#allocation2 + $0x4] sm:$0xff]
      %v463 = vld [vmem:[#allocation2 + $0xc] sm:$0xf]
      %464 = vrot.lane.b32.xlu0 %v413, 1
      %v465 = vpop.permute.xlu0 %464
      %v466 = vrot.slane %v465, 4
      %v467 = vsel %vm456, %v466, %v465
      %vm468 = vcmp.ne.s16.totalorder %v467, 0
      %vm469 = vcmp.ne.s16.totalorder %v466, 0
      %v470 = vsel %vm468, %v462, 0
      %v471 = vsel %vm469, %v463, 0
      %474 = vrot.lane.b32.xlu0 %v470, 127
      %v475 = vpop.permute.xlu0 %474
      %476 = vrot.lane.b32.xlu0 %v471, 127
      %v477 = vpop.permute.xlu0 %476
      %v478 = vrot.slane %v475, 4
      %v479 = vrot.slane %v477, 4
      %v480 = vsel %vm385, %v478, %v479
      %v481 = vsel %vm441, %v475, %v480
      %483 = vst [vmem:[#allocation4 + $0x28] sm:$0xff] %v481
      %v484 = vld [vmem:[#allocation2 + $0x4] sm:$0xff]
      %v485 = vld [vmem:[#allocation2 + $0xc] sm:$0xf]
      %486 = vrot.lane.b32.xlu0 %v367, 15
      %v487 = vpop.permute.xlu0 %486
      %v488 = vrot.slane %v487, 4
      %v489 = vsel %vm432, %v488, %v487
      %vm490 = vcmp.ne.s16.totalorder %v489, 0
      %vm491 = vcmp.ne.s16.totalorder %v488, 0
      %v492 = vsel %vm490, %v484, 0
      %v493 = vsel %vm491, %v485, 0
      %496 = vrot.lane.b32.xlu0 %v492, 113
      %v497 = vpop.permute.xlu0 %496
      %498 = vrot.lane.b32.xlu0 %v493, 113
      %v499 = vpop.permute.xlu0 %498
      %v500 = vrot.slane %v497, 4
      %v501 = vrot.slane %v499, 4
      %v502 = vsel %vm385, %v500, %v501
      %v503 = vsel %vm417, %v497, %v502
      %505 = vst [vmem:[#allocation4 + $0x30] sm:$0xff] %v503
      %v506 = vld [vmem:[#allocation2 + $0x4] sm:$0xff]
      %v507 = vld [vmem:[#allocation2 + $0xc] sm:$0xf]
      %510 = vrot.lane.b32.xlu0 %v506, 112
      %v511 = vpop.permute.xlu0 %510
      %512 = vrot.lane.b32.xlu0 %v507, 112
      %v513 = vpop.permute.xlu0 %512
      %v514 = vrot.slane %v511, 4
      %v515 = vrot.slane %v513, 4
      %v516 = vsel %vm385, %v514, %v515
      %vm517 = vcmask 916480
      %v518 = vsel %vm517, %v511, %v516
      %520 = vst [vmem:[#allocation4 + $0x38] sm:$0xff] %v518
      %v521 = vld [vmem:[#allocation2 + $0x4] sm:$0xff]
      %v522 = vld [vmem:[#allocation2 + $0xc] sm:$0xf]
      %523 = vrot.lane.b32.xlu0 %v413, 17
      %v524 = vpop.permute.xlu0 %523
      %v525 = vrot.slane %v524, 4
      %v526 = vsel %vm387, %v525, %v524
      %vm527 = vcmp.ne.s16.totalorder %v526, 0
      %vm528 = vcmp.ne.s16.totalorder %v525, 0
      %v529 = vsel %vm527, %v521, 0
      %v530 = vsel %vm528, %v522, 0
      %533 = vrot.lane.b32.xlu0 %v529, 111
      %v534 = vpop.permute.xlu0 %533
      %535 = vrot.lane.b32.xlu0 %v530, 111
      %v536 = vpop.permute.xlu0 %535
      %v537 = vrot.slane %v534, 4
      %v538 = vrot.slane %v536, 4
      %v539 = vsel %vm385, %v537, %v538
      %v540 = vsel %vm371, %v534, %v539
      %542 = vst [vmem:[#allocation4 + $0x40] sm:$0xff] %v540
      %v543 = vld [vmem:[%s4] sm:$0xf]
      %v544 = vld [vmem:[#allocation4] sm:$0xff]
      %v545 = vld [vmem:[#allocation4 + $0x8] sm:$0xff]
      %v546 = vld [vmem:[#allocation4 + $0x10] sm:$0xff]
      %v547 = vld [vmem:[#allocation4 + $0x18] sm:$0xff]
      %v548 = vld [vmem:[#allocation4 + $0x20] sm:$0xff]
      %v549 = vld [vmem:[#allocation4 + $0x28] sm:$0xff]
      %v550 = vld [vmem:[#allocation4 + $0x30] sm:$0xff]
      %v551 = vld [vmem:[#allocation4 + $0x38] sm:$0xff]
      %v552 = vld [vmem:[#allocation4 + $0x40] sm:$0xff]
      %v553 = vld [vmem:[%s3] sm:$0xff]
      %555 = vset.pattern.permute.xlu0 0
      %556 = vperm.xlu0 %555, %v553
      %v557 = vpop.permute.xlu0 %556
      %v568 = vunpack.c.l.b16 %v544
      %v569 = vunpack.c.h.b16 %v544
      %v570 = vunpack.c.l.b16 %v545
      %v571 = vunpack.c.h.b16 %v545
      %v572 = vunpack.c.l.b16 %v546
      %v573 = vunpack.c.h.b16 %v546
      %v574 = vunpack.c.l.b16 %v547
      %v575 = vunpack.c.h.b16 %v547
      %v576 = vunpack.c.l.b16 %v548
      %v577 = vunpack.c.h.b16 %v548
      %v578 = vunpack.c.l.b16 %v549
      %v579 = vunpack.c.h.b16 %v549
      %v580 = vunpack.c.l.b16 %v550
      %v581 = vunpack.c.h.b16 %v550
      %v582 = vunpack.c.l.b16 %v551
      %v583 = vunpack.c.h.b16 %v551
      %v584 = vunpack.c.l.b16 %v552
      %v585 = vunpack.c.h.b16 %v552
      %v586 = vpack.c.b16 %v570, %v568
      %v587 = vpack.c.b16 %v571, %v569
      %v588 = vpack.c.b16 %v574, %v572
      %v589 = vpack.c.b16 %v575, %v573
      %v590 = vpack.c.b16 %v578, %v576
      %v591 = vpack.c.b16 %v579, %v577
      %v592 = vpack.c.b16 %v582, %v580
      %v593 = vpack.c.b16 %v583, %v581
      %v594 = vpack.c.b16 %v584, %v584
      %v595 = vpack.c.b16 %v585, %v585
      %vm604 = vcmask 588800
      %v606 = vsel %vm604, %v543, 0
      %vm608 = vcmask 1043456
      %v610 = vsel %vm608, %v594, 0
      %v613 = vsel %vm608, %v595, 0
      %615 = vmatprep.subr.bf16.mxu0 %v587
      %616 = vmatpush1.bf16.msra.mxu0 %v586
      %617 = vmatprep.subr.bf16.mxu0 %v589
      %618 = vmatpush1.bf16.msra.mxu0 %v588
      %619 = vmatprep.subr.bf16.mxu0 %v591
      %620 = vmatpush1.bf16.msra.mxu0 %v590
      %621 = vmatprep.subr.bf16.mxu0 %v593
      %622 = vmatpush1.bf16.msra.mxu0 %v592
      %623 = vmatprep.subr.bf16.mxu0 %v613
      %624 = vmatpush1.bf16.msra.mxu0 %v610
      %625 = vmatprep.subr.bf16.mxu0 0
      %626 = vmatpush1.bf16.msra.mxu0 0
      %627 = vmatprep.subr.bf16.mxu0 0
      %628 = vmatpush1.bf16.msra.mxu0 0
      %629 = vmatprep.subr.bf16.mxu0 0
      %630 = vmatpush1.bf16.msra.mxu0 0
      %631 = vmatprep.subr.bf16.mxu0 0
      %632 = vmatpush1.bf16.msra.mxu0 0
      %633 = vmatprep.subr.bf16.mxu0 0
      %634 = vmatpush1.bf16.msra.mxu0 0
      %635 = vmatprep.subr.bf16.mxu0 0
      %636 = vmatpush1.bf16.msra.mxu0 0
      %637 = vmatprep.subr.bf16.mxu0 0
      %638 = vmatpush1.bf16.msra.mxu0 0
      %639 = vmatprep.subr.bf16.mxu0 0
      %640 = vmatpush1.bf16.msra.mxu0 0
      %641 = vmatprep.subr.bf16.mxu0 0
      %642 = vmatpush1.bf16.msra.mxu0 0
      %643 = vmatprep.subr.bf16.mxu0 0
      %644 = vmatpush1.bf16.msra.mxu0 0
      %645 = vmatprep.subr.bf16.mxu0 0
      %646 = vmatpush1.bf16.msra.mxu0 0
      %647 = vmatprep.mubr.bf16.mxu0 0
      %648 = vmatmul.mubr.bf16.gmra.mrb[0].mxu0 %v606
      %v649 = vpop.f32.mrb[0].mxu0
      %v650 = vadd.f32 %v557, %v649
      %v651 = vpop.f32.mrb[0].mxu0
      %v652 = vadd.f32 %v557, %v651
      %v653 = vpop.f32.mrb[0].mxu0
      %v654 = vpop.f32.mrb[0].mxu0
      %655 = vdwg.mxu0
      %v656 = vmax.f32 %v650, 0.0
      %v657 = vmax.f32 %v652, 0.0
      %v658 = vpack.c.bf16 %v656, %v656
      %v659 = vpack.c.bf16 %v657, %v657
      %v662 = vunpack.c.l.b16 %v658
      %v663 = vunpack.c.l.b16 %v659
      %v664 = vpack.c.b16 %v663, %v662
      %666 = vst [vmem:[#allocation3 + $0x4] sm:$0xff] %v664
      %v667 = vld [vmem:[#allocation2 + $0x4] sm:$0xff]
      %v668 = vld [vmem:[%s6] sm:$0xf]
      %v670 = vunpack.c.l.b16 %v667
      %v671 = vunpack.c.h.b16 %v667
      %v672 = vpack.c.b16 %v670, %v670
      %v673 = vpack.c.b16 %v671, %v671
      %vm674 = vcmask 64512
      %v676 = vsel %vm674, %v668, 0
      %v679 = vsel %vm608, %v672, 0
      %v682 = vsel %vm608, %v673, 0
      %684 = vmatprep.subr.bf16.mxu0 %v682
      %685 = vmatpush1.bf16.msra.mxu0 %v679
      %686 = vmatprep.subr.bf16.mxu0 0
      %687 = vmatpush1.bf16.msra.mxu0 0
      %688 = vmatprep.subr.bf16.mxu0 0
      %689 = vmatpush1.bf16.msra.mxu0 0
      %690 = vmatprep.subr.bf16.mxu0 0
      %691 = vmatpush1.bf16.msra.mxu0 0
      %692 = vmatprep.subr.bf16.mxu0 0
      %693 = vmatpush1.bf16.msra.mxu0 0
      %694 = vmatprep.subr.bf16.mxu0 0
      %695 = vmatpush1.bf16.msra.mxu0 0
      %696 = vmatprep.subr.bf16.mxu0 0
      %697 = vmatpush1.bf16.msra.mxu0 0
      %698 = vmatprep.subr.bf16.mxu0 0
      %699 = vmatpush1.bf16.msra.mxu0 0
      %700 = vmatprep.subr.bf16.mxu0 0
      %701 = vmatpush1.bf16.msra.mxu0 0
      %702 = vmatprep.subr.bf16.mxu0 0
      %703 = vmatpush1.bf16.msra.mxu0 0
      %704 = vmatprep.subr.bf16.mxu0 0
      %705 = vmatpush1.bf16.msra.mxu0 0
      %706 = vmatprep.subr.bf16.mxu0 0
      %707 = vmatpush1.bf16.msra.mxu0 0
      %708 = vmatprep.subr.bf16.mxu0 0
      %709 = vmatpush1.bf16.msra.mxu0 0
      %710 = vmatprep.subr.bf16.mxu0 0
      %711 = vmatpush1.bf16.msra.mxu0 0
      %712 = vmatprep.subr.bf16.mxu0 0
      %713 = vmatpush1.bf16.msra.mxu0 0
      %714 = vmatprep.subr.bf16.mxu0 0
      %715 = vmatpush1.bf16.msra.mxu0 0
      %716 = vmatprep.mubr.bf16.mxu0 0
      %717 = vmatmul.mubr.bf16.gmra.mrb[0].mxu0 %v676
      %v718 = vpop.f32.mrb[0].mxu0
      %v719 = vadd.f32 0.0, %v718
      %v720 = vpop.f32.mrb[0].mxu0
      %v721 = vadd.f32 0.0, %v720
      %v722 = vpop.f32.mrb[0].mxu0
      %v723 = vpop.f32.mrb[0].mxu0
      %724 = vdwg.mxu0
      %v725 = vld [vmem:[#allocation3] sm:$0xff]
      %v726 = vld [vmem:[#allocation3 + $0x8] sm:$0xf]
      %v727 = vsel %vm373, %v725, 0
      %v728 = vsel %vm374, %v726, 0
      %731 = vrot.lane.b32.xlu0 %v727, 17
      %v732 = vpop.permute.xlu0 %731
      %733 = vrot.lane.b32.xlu0 %v728, 17
      %v734 = vpop.permute.xlu0 %733
      %v735 = vrot.slane %v732, 4
      %v736 = vrot.slane %v734, 4
      %v737 = vsel %vm385, %v735, %v736
      %v738 = vsel %vm387, %v732, %v737
      %740 = vst [vmem:[#allocation4] sm:$0xff] %v738
      %v741 = vld [vmem:[#allocation3] sm:$0xff]
      %v742 = vld [vmem:[#allocation3 + $0x8] sm:$0xf]
      %745 = vrot.lane.b32.xlu0 %v741, 16
      %v746 = vpop.permute.xlu0 %745
      %747 = vrot.lane.b32.xlu0 %v742, 16
      %v748 = vpop.permute.xlu0 %747
      %v749 = vrot.slane %v746, 4
      %v750 = vrot.slane %v748, 4
      %v751 = vsel %vm385, %v749, %v750
      %v752 = vsel %vm402, %v746, %v751
      %754 = vst [vmem:[#allocation4 + $0x8] sm:$0xff] %v752
      %v755 = vld [vmem:[#allocation3] sm:$0xff]
      %v756 = vld [vmem:[#allocation3 + $0x8] sm:$0xf]
      %v757 = vsel %vm419, %v755, 0
      %v758 = vsel %vm420, %v756, 0
      %761 = vrot.lane.b32.xlu0 %v757, 15
      %v762 = vpop.permute.xlu0 %761
      %763 = vrot.lane.b32.xlu0 %v758, 15
      %v764 = vpop.permute.xlu0 %763
      %v765 = vrot.slane %v762, 4
      %v766 = vrot.slane %v764, 4
      %v767 = vsel %vm385, %v765, %v766
      %v768 = vsel %vm432, %v762, %v767
      %770 = vst [vmem:[#allocation4 + $0x10] sm:$0xff] %v768
      %v771 = vld [vmem:[#allocation3] sm:$0xff]
      %v772 = vld [vmem:[#allocation3 + $0x8] sm:$0xf]
      %v773 = vsel %vm443, %v771, 0
      %v774 = vsel %vm444, %v772, 0
      %777 = vrot.lane.b32.xlu0 %v773, 1
      %v778 = vpop.permute.xlu0 %777
      %779 = vrot.lane.b32.xlu0 %v774, 1
      %v780 = vpop.permute.xlu0 %779
      %v781 = vrot.slane %v778, 4
      %v782 = vrot.slane %v780, 4
      %v783 = vsel %vm385, %v781, %v782
      %v784 = vsel %vm456, %v778, %v783
      %786 = vst [vmem:[#allocation4 + $0x18] sm:$0xff] %v784
      %v787 = vld [vmem:[#allocation3 + $0x4] sm:$0xff]
      %788 = vst [vmem:[#allocation4 + $0x20] sm:$0xff] %v787
      %v789 = vld [vmem:[#allocation3 + $0x4] sm:$0xff]
      %v790 = vld [vmem:[#allocation3 + $0xc] sm:$0xf]
      %v791 = vsel %vm468, %v789, 0
      %v792 = vsel %vm469, %v790, 0
      %795 = vrot.lane.b32.xlu0 %v791, 127
      %v796 = vpop.permute.xlu0 %795
      %797 = vrot.lane.b32.xlu0 %v792, 127
      %v798 = vpop.permute.xlu0 %797
      %v799 = vrot.slane %v796, 4
      %v800 = vrot.slane %v798, 4
      %v801 = vsel %vm385, %v799, %v800
      %v802 = vsel %vm441, %v796, %v801
      %804 = vst [vmem:[#allocation4 + $0x28] sm:$0xff] %v802
      %v805 = vld [vmem:[#allocation3 + $0x4] sm:$0xff]
      %v806 = vld [vmem:[#allocation3 + $0xc] sm:$0xf]
      %v807 = vsel %vm490, %v805, 0
      %v808 = vsel %vm491, %v806, 0
      %811 = vrot.lane.b32.xlu0 %v807, 113
      %v812 = vpop.permute.xlu0 %811
      %813 = vrot.lane.b32.xlu0 %v808, 113
      %v814 = vpop.permute.xlu0 %813
      %v815 = vrot.slane %v812, 4
      %v816 = vrot.slane %v814, 4
      %v817 = vsel %vm385, %v815, %v816
      %v818 = vsel %vm417, %v812, %v817
      %820 = vst [vmem:[#allocation4 + $0x30] sm:$0xff] %v818
      %v821 = vld [vmem:[#allocation3 + $0x4] sm:$0xff]
      %v822 = vld [vmem:[#allocation3 + $0xc] sm:$0xf]
      %825 = vrot.lane.b32.xlu0 %v821, 112
      %v826 = vpop.permute.xlu0 %825
      %827 = vrot.lane.b32.xlu0 %v822, 112
      %v828 = vpop.permute.xlu0 %827
      %v829 = vrot.slane %v826, 4
      %v830 = vrot.slane %v828, 4
      %v831 = vsel %vm385, %v829, %v830
      %v832 = vsel %vm517, %v826, %v831
      %834 = vst [vmem:[#allocation4 + $0x38] sm:$0xff] %v832
      %v835 = vld [vmem:[#allocation3 + $0x4] sm:$0xff]
      %v836 = vld [vmem:[#allocation3 + $0xc] sm:$0xf]
      %v837 = vsel %vm527, %v835, 0
      %v838 = vsel %vm528, %v836, 0
      %841 = vrot.lane.b32.xlu0 %v837, 111
      %v842 = vpop.permute.xlu0 %841
      %843 = vrot.lane.b32.xlu0 %v838, 111
      %v844 = vpop.permute.xlu0 %843
      %v845 = vrot.slane %v842, 4
      %v846 = vrot.slane %v844, 4
      %v847 = vsel %vm385, %v845, %v846
      %v848 = vsel %vm371, %v842, %v847
      %850 = vst [vmem:[#allocation4 + $0x40] sm:$0xff] %v848
      %v851 = vld [vmem:[%s5] sm:$0xf]
      %v852 = vld [vmem:[#allocation4] sm:$0xff]
      %v853 = vld [vmem:[#allocation4 + $0x8] sm:$0xff]
      %v854 = vld [vmem:[#allocation4 + $0x10] sm:$0xff]
      %v855 = vld [vmem:[#allocation4 + $0x18] sm:$0xff]
      %v856 = vld [vmem:[#allocation4 + $0x20] sm:$0xff]
      %v857 = vld [vmem:[#allocation4 + $0x28] sm:$0xff]
      %v858 = vld [vmem:[#allocation4 + $0x30] sm:$0xff]
      %v859 = vld [vmem:[#allocation4 + $0x38] sm:$0xff]
      %v860 = vld [vmem:[#allocation4 + $0x40] sm:$0xff]
      %v870 = vunpack.c.l.b16 %v852
      %v871 = vunpack.c.h.b16 %v852
      %v872 = vunpack.c.l.b16 %v853
      %v873 = vunpack.c.h.b16 %v853
      %v874 = vunpack.c.l.b16 %v854
      %v875 = vunpack.c.h.b16 %v854
      %v876 = vunpack.c.l.b16 %v855
      %v877 = vunpack.c.h.b16 %v855
      %v878 = vunpack.c.l.b16 %v856
      %v879 = vunpack.c.h.b16 %v856
      %v880 = vunpack.c.l.b16 %v857
      %v881 = vunpack.c.h.b16 %v857
      %v882 = vunpack.c.l.b16 %v858
      %v883 = vunpack.c.h.b16 %v858
      %v884 = vunpack.c.l.b16 %v859
      %v885 = vunpack.c.h.b16 %v859
      %v886 = vunpack.c.l.b16 %v860
      %v887 = vunpack.c.h.b16 %v860
      %v888 = vpack.c.b16 %v872, %v870
      %v889 = vpack.c.b16 %v873, %v871
      %v890 = vpack.c.b16 %v876, %v874
      %v891 = vpack.c.b16 %v877, %v875
      %v892 = vpack.c.b16 %v880, %v878
      %v893 = vpack.c.b16 %v881, %v879
      %v894 = vpack.c.b16 %v884, %v882
      %v895 = vpack.c.b16 %v885, %v883
      %v896 = vpack.c.b16 %v886, %v886
      %v897 = vpack.c.b16 %v887, %v887
      %v907 = vsel %vm604, %v851, 0
      %v910 = vsel %vm608, %v896, 0
      %v913 = vsel %vm608, %v897, 0
      %915 = vmatprep.subr.bf16.mxu0 %v889
      %916 = vmatpush1.bf16.msra.mxu0 %v888
      %917 = vmatprep.subr.bf16.mxu0 %v891
      %918 = vmatpush1.bf16.msra.mxu0 %v890
      %919 = vmatprep.subr.bf16.mxu0 %v893
      %920 = vmatpush1.bf16.msra.mxu0 %v892
      %921 = vmatprep.subr.bf16.mxu0 %v895
      %922 = vmatpush1.bf16.msra.mxu0 %v894
      %923 = vmatprep.subr.bf16.mxu0 %v913
      %924 = vmatpush1.bf16.msra.mxu0 %v910
      %925 = vmatprep.subr.bf16.mxu0 0
      %926 = vmatpush1.bf16.msra.mxu0 0
      %927 = vmatprep.subr.bf16.mxu0 0
      %928 = vmatpush1.bf16.msra.mxu0 0
      %929 = vmatprep.subr.bf16.mxu0 0
      %930 = vmatpush1.bf16.msra.mxu0 0
      %931 = vmatprep.subr.bf16.mxu0 0
      %932 = vmatpush1.bf16.msra.mxu0 0
      %933 = vmatprep.subr.bf16.mxu0 0
      %934 = vmatpush1.bf16.msra.mxu0 0
      %935 = vmatprep.subr.bf16.mxu0 0
      %936 = vmatpush1.bf16.msra.mxu0 0
      %937 = vmatprep.subr.bf16.mxu0 0
      %938 = vmatpush1.bf16.msra.mxu0 0
      %939 = vmatprep.subr.bf16.mxu0 0
      %940 = vmatpush1.bf16.msra.mxu0 0
      %941 = vmatprep.subr.bf16.mxu0 0
      %942 = vmatpush1.bf16.msra.mxu0 0
      %943 = vmatprep.subr.bf16.mxu0 0
      %944 = vmatpush1.bf16.msra.mxu0 0
      %945 = vmatprep.subr.bf16.mxu0 0
      %946 = vmatpush1.bf16.msra.mxu0 0
      %947 = vmatprep.mubr.bf16.mxu0 0
      %948 = vmatmul.mubr.bf16.gmra.mrb[0].mxu0 %v907
      %v949 = vpop.f32.mrb[0].mxu0
      %v950 = vadd.f32 %v719, %v949
      %v951 = vpop.f32.mrb[0].mxu0
      %v952 = vadd.f32 %v721, %v951
      %v953 = vpop.f32.mrb[0].mxu0
      %v954 = vpop.f32.mrb[0].mxu0
      %955 = vdwg.mxu0
      %956 = vst [vmem:[%s278] sm:$0xff] %v950
      %957 = vst [vmem:[%s278 + $0x8] sm:$0xff] %v952
      %p958 = scmp.lt.s32.totalorder %s18, 1
      %s959 = scalar_select %p958, %s18, 1
      %s960 = smul.addr %s959, 2
      %s961 = smul.addr %s960, 8
      %s962 = scalar_lea.vmem %s7, %s961
      // Predicated region
      $region49: #{_lambda_.2} parent=47 // pred_check
        %p963 = pneg %p188
      $region50: #{_lambda_.2} parent=47 // pred_check_branch
        %965 = sbr.rel (%p963) target = $region52
      $region51: #{_lambda_.2} parent=47 // pred_region
        _
      $region52: #{_lambda_.2} parent=47 // pred_fallthru
        _
    $region48: #{_lambda_.2} parent=5 // pred_fallthru
      _
    %p966 = scmp.le.s32.totalorder 2, %s13
    // Predicated region
    $region53: #{_lambda_.2} parent=5 // pred_check
      %p967 = pneg %p966
    $region54: #{_lambda_.2} parent=5 // pred_check_branch
      %969 = sbr.rel (%p967) target = $region56
    $region55: #{_lambda_.2} parent=5 // pred_region
      %s970 = ssub.s32 %s13, 2
      // Predicated region
      $region57: #{_lambda_.2} parent=55 // pred_check
        %p971 = pneg %p194
      $region58: #{_lambda_.2} parent=55 // pred_check_branch
        %973 = sbr.rel (%p971) target = $region60
      $region59: #{_lambda_.2} parent=55 // pred_region
        %p974 = scmp.lt.s32.totalorder %s19, 1
        %s975 = scalar_select %p974, %s19, 1
        %s976 = smul.addr %s975, 2
        %s977 = smul.addr %s976, 8
        %s978 = scalar_lea.vmem %s7, %s977
      $region60: #{_lambda_.2} parent=55 // pred_fallthru
        _
    $region56: #{_lambda_.2} parent=5 // pred_fallthru
      _
  $region6: #{_lambda_.2} parent=0 // loop_footer
    %s17 = sadd.s32 1, %s13
  $region7: #{_lambda_.2} parent=0 // loop_footer_branch
    %12 = sbr.rel target = $region3
  $region8: #{_lambda_.2} parent=0 // loop_exit
    _

// kernel: _lambda_.3
$region0: #{_lambda_.3}
  #allocation0 [shape = 'u32[]', space=smem, size = 0x4, offset = 0x4, fixed_abs, tag = 'smem constant byte address 0x4 - core index']
  #allocation1 [shape = 'u32[144,128]{1,0:T(1,128)}', space=vmem, size = 0x12000, scoped, tag = 'internal scratch']
  #allocation2 [shape = 'bf16[8,512]{1,0:T(8,128)(2,1)}', space=vmem, size = 0x2000, scoped, tag = 'scratch operand']
  #allocation3 [shape = 'bf16[8,512]{1,0:T(8,128)(2,1)}', space=vmem, size = 0x2000, scoped, tag = 'scratch operand']
  #allocation4 [shape = 'bf16[72,256]{1,0:T(8,128)(2,1)}', space=vmem, size = 0x9000, scoped, tag = 'scratch operand']
  %s0 = inlined_call_operand.vmem [shape: f32[2,8,256], index: 0, kind: input, shape index: {}]
  %s1 = inlined_call_operand.vmem [shape: f32[8,1], index: 1, kind: input, shape index: {}]
  %s2 = inlined_call_operand.vmem [shape: f32[8,1], index: 2, kind: input, shape index: {}]
  %s3 = inlined_call_operand.vmem [shape: f32[8,1], index: 3, kind: input, shape index: {}]
  %s4 = inlined_call_operand.vmem [shape: bf16[8,72], index: 4, kind: input, shape index: {}]
  %s5 = inlined_call_operand.vmem [shape: bf16[8,72], index: 5, kind: input, shape index: {}]
  %s6 = inlined_call_operand.vmem [shape: f32[2,8,256], index: 6, kind: output, shape index: {}]
  %s7 = sld [smem:[#allocation0]]
  $region57: #{_lambda_.3} parent=0
    _
  %s9 = ssub.s32 1, %s7
  %s10 = scalar_select 0, %s9, %s7
  loop: start=0, step=1, limit=4
  $region2: #{_lambda_.3} parent=0 // loop_pre_header
    _
  $region3: #{_lambda_.3} parent=0 // loop_header
    %s12 = sphi 0, %s16
    %p13 = scmp.ge.s32.totalorder %s12, 4
    %s22 = sphi 0, %s24
    %s25 = sphi 0, %s22
    %s26 = sphi 0, %s25
    %s42 = sphi 0, %s26
    %s46 = sphi 0, %s46
    %s48 = sphi 0, %s46
    %s49 = sphi 0, %s48
    %s63 = sphi 0, %s49
    %s67 = sphi 0, %s67
    %s69 = sphi 0, %s67
    %s70 = sphi 0, %s69
    %s84 = sphi 0, %s70
    %s88 = sphi 0, %s88
    %s90 = sphi 0, %s88
    %s91 = sphi 0, %s90
    %s105 = sphi 0, %s91
    %s109 = sphi 0, %s109
    %s111 = sphi 0, %s109
    %s112 = sphi 0, %s111
    %s126 = sphi 0, %s112
    %s130 = sphi 0, %s130
    %s132 = sphi 0, %s130
    %s133 = sphi 0, %s132
    %s147 = sphi 0, %s133
    %s153 = sphi 0, %s155
    %s156 = sphi 0, %s153
    %s157 = sphi 0, %s156
    %s173 = sphi 0, %s157
  $region4: #{_lambda_.3} parent=0 // loop_header_branch
    %15 = sbr.rel (%p13) target = $region8
  $region5: #{_lambda_.3} parent=0 // loop_body
    %s17 = ssub.s32 %s12, 1
    %s18 = ssub.s32 %s12, 2
    %s19 = sadd.s32 %s12, 1
    %s20 = ssub.s32 %s12, %s19
    %p21 = scmp.eq.s32.totalorder %s20, 0
    %s23 = sadd.s32 %s22, 1
    %s24 = scalar_select %p21, %s22, %s23
    %p27 = pneg %p21
    %p28 = scmp.eq.s32.totalorder %s12, 1
    %p29 = por %p27, %p28
    %p30 = scmp.ne.s32.totalorder %s22, %s25
    %p31 = scmp.eq.s32.totalorder %s12, 0
    %p32 = por %p30, %p31
    %p33 = scmp.ne.s32.totalorder %s22, %s25
    %p34 = scmp.eq.s32.totalorder %s17, 1
    %p35 = por %p33, %p34
    %p36 = scmp.ne.s32.totalorder %s25, %s26
    %p37 = scmp.eq.s32.totalorder %s17, 0
    %p38 = por %p36, %p37
    %p39 = scmp.ne.s32.totalorder %s25, %s26
    %p40 = scmp.eq.s32.totalorder %s18, 1
    %p41 = por %p39, %p40
    %p43 = scmp.ne.s32.totalorder %s26, %s42
    %p44 = scmp.eq.s32.totalorder %s18, 0
    %p45 = por %p43, %p44
    %s47 = sadd.s32 %s46, 1
    %p50 = scmp.eq.s32.totalorder %s12, 1
    %p51 = scmp.ne.s32.totalorder %s46, %s48
    %p52 = scmp.eq.s32.totalorder %s12, 0
    %p53 = por %p51, %p52
    %p54 = scmp.ne.s32.totalorder %s46, %s48
    %p55 = scmp.eq.s32.totalorder %s17, 1
    %p56 = por %p54, %p55
    %p57 = scmp.ne.s32.totalorder %s48, %s49
    %p58 = scmp.eq.s32.totalorder %s17, 0
    %p59 = por %p57, %p58
    %p60 = scmp.ne.s32.totalorder %s48, %s49
    %p61 = scmp.eq.s32.totalorder %s18, 1
    %p62 = por %p60, %p61
    %p64 = scmp.ne.s32.totalorder %s49, %s63
    %p65 = scmp.eq.s32.totalorder %s18, 0
    %p66 = por %p64, %p65
    %s68 = sadd.s32 %s67, 1
    %p71 = scmp.eq.s32.totalorder %s12, 1
    %p72 = scmp.ne.s32.totalorder %s67, %s69
    %p73 = scmp.eq.s32.totalorder %s12, 0
    %p74 = por %p72, %p73
    %p75 = scmp.ne.s32.totalorder %s67, %s69
    %p76 = scmp.eq.s32.totalorder %s17, 1
    %p77 = por %p75, %p76
    %p78 = scmp.ne.s32.totalorder %s69, %s70
    %p79 = scmp.eq.s32.totalorder %s17, 0
    %p80 = por %p78, %p79
    %p81 = scmp.ne.s32.totalorder %s69, %s70
    %p82 = scmp.eq.s32.totalorder %s18, 1
    %p83 = por %p81, %p82
    %p85 = scmp.ne.s32.totalorder %s70, %s84
    %p86 = scmp.eq.s32.totalorder %s18, 0
    %p87 = por %p85, %p86
    %s89 = sadd.s32 %s88, 1
    %p92 = scmp.eq.s32.totalorder %s12, 1
    %p93 = scmp.ne.s32.totalorder %s88, %s90
    %p94 = scmp.eq.s32.totalorder %s12, 0
    %p95 = por %p93, %p94
    %p96 = scmp.ne.s32.totalorder %s88, %s90
    %p97 = scmp.eq.s32.totalorder %s17, 1
    %p98 = por %p96, %p97
    %p99 = scmp.ne.s32.totalorder %s90, %s91
    %p100 = scmp.eq.s32.totalorder %s17, 0
    %p101 = por %p99, %p100
    %p102 = scmp.ne.s32.totalorder %s90, %s91
    %p103 = scmp.eq.s32.totalorder %s18, 1
    %p104 = por %p102, %p103
    %p106 = scmp.ne.s32.totalorder %s91, %s105
    %p107 = scmp.eq.s32.totalorder %s18, 0
    %p108 = por %p106, %p107
    %s110 = sadd.s32 %s109, 1
    %p113 = scmp.eq.s32.totalorder %s12, 1
    %p114 = scmp.ne.s32.totalorder %s109, %s111
    %p115 = scmp.eq.s32.totalorder %s12, 0
    %p116 = por %p114, %p115
    %p117 = scmp.ne.s32.totalorder %s109, %s111
    %p118 = scmp.eq.s32.totalorder %s17, 1
    %p119 = por %p117, %p118
    %p120 = scmp.ne.s32.totalorder %s111, %s112
    %p121 = scmp.eq.s32.totalorder %s17, 0
    %p122 = por %p120, %p121
    %p123 = scmp.ne.s32.totalorder %s111, %s112
    %p124 = scmp.eq.s32.totalorder %s18, 1
    %p125 = por %p123, %p124
    %p127 = scmp.ne.s32.totalorder %s112, %s126
    %p128 = scmp.eq.s32.totalorder %s18, 0
    %p129 = por %p127, %p128
    %s131 = sadd.s32 %s130, 1
    %p134 = scmp.eq.s32.totalorder %s12, 1
    %p135 = scmp.ne.s32.totalorder %s130, %s132
    %p136 = scmp.eq.s32.totalorder %s12, 0
    %p137 = por %p135, %p136
    %p138 = scmp.ne.s32.totalorder %s130, %s132
    %p139 = scmp.eq.s32.totalorder %s17, 1
    %p140 = por %p138, %p139
    %p141 = scmp.ne.s32.totalorder %s132, %s133
    %p142 = scmp.eq.s32.totalorder %s17, 0
    %p143 = por %p141, %p142
    %p144 = scmp.ne.s32.totalorder %s132, %s133
    %p145 = scmp.eq.s32.totalorder %s18, 1
    %p146 = por %p144, %p145
    %p148 = scmp.ne.s32.totalorder %s133, %s147
    %p149 = scmp.eq.s32.totalorder %s18, 0
    %p150 = por %p148, %p149
    %s151 = ssub.s32 %s12, %s19
    %p152 = scmp.eq.s32.totalorder %s151, 0
    %s154 = sadd.s32 %s153, 1
    %s155 = scalar_select %p152, %s153, %s154
    %p158 = pneg %p152
    %p159 = scmp.eq.s32.totalorder %s12, 1
    %p160 = por %p158, %p159
    %p161 = scmp.ne.s32.totalorder %s153, %s156
    %p162 = scmp.eq.s32.totalorder %s12, 0
    %p163 = por %p161, %p162
    %p164 = scmp.ne.s32.totalorder %s153, %s156
    %p165 = scmp.eq.s32.totalorder %s17, 1
    %p166 = por %p164, %p165
    %p167 = scmp.ne.s32.totalorder %s156, %s157
    %p168 = scmp.eq.s32.totalorder %s17, 0
    %p169 = por %p167, %p168
    %p170 = scmp.ne.s32.totalorder %s156, %s157
    %p171 = scmp.eq.s32.totalorder %s18, 1
    %p172 = por %p170, %p171
    %p174 = scmp.ne.s32.totalorder %s157, %s173
    %p175 = scmp.eq.s32.totalorder %s18, 0
    %p176 = por %p174, %p175
    %p177 = scmp.le.s32.totalorder 1, %s12
    %p178 = scmp.lt.s32.totalorder %s12, 3
    %p179 = pnand %p177, %p178
    %p180 = pneg %p179
    // Predicated region
    $region9: #{_lambda_.3} parent=5 // pred_check
      _
    $region10: #{_lambda_.3} parent=5 // pred_check_branch
      %182 = sbr.rel (%p179) target = $region12
    $region11: #{_lambda_.3} parent=5 // pred_region
      %s183 = ssub.s32 %s12, 1
      // Predicated region
      $region13: #{_lambda_.3} parent=11 // pred_check
        %p184 = pneg %p59
      $region14: #{_lambda_.3} parent=11 // pred_check_branch
        %186 = sbr.rel (%p184) target = $region16
      $region15: #{_lambda_.3} parent=11 // pred_region
        _
      $region16: #{_lambda_.3} parent=11 // pred_fallthru
        _
      // Predicated region
      $region17: #{_lambda_.3} parent=11 // pred_check
        %p187 = pneg %p80
      $region18: #{_lambda_.3} parent=11 // pred_check_branch
        %189 = sbr.rel (%p187) target = $region20
      $region19: #{_lambda_.3} parent=11 // pred_region
        _
      $region20: #{_lambda_.3} parent=11 // pred_fallthru
        _
      // Predicated region
      $region21: #{_lambda_.3} parent=11 // pred_check
        %p190 = pneg %p101
      $region22: #{_lambda_.3} parent=11 // pred_check_branch
        %192 = sbr.rel (%p190) target = $region24
      $region23: #{_lambda_.3} parent=11 // pred_region
        _
      $region24: #{_lambda_.3} parent=11 // pred_fallthru
        _
      // Predicated region
      $region25: #{_lambda_.3} parent=11 // pred_check
        %p193 = pneg %p122
      $region26: #{_lambda_.3} parent=11 // pred_check_branch
        %195 = sbr.rel (%p193) target = $region28
      $region27: #{_lambda_.3} parent=11 // pred_region
        _
      $region28: #{_lambda_.3} parent=11 // pred_fallthru
        _
      // Predicated region
      $region29: #{_lambda_.3} parent=11 // pred_check
        %p196 = pneg %p143
      $region30: #{_lambda_.3} parent=11 // pred_check_branch
        %198 = sbr.rel (%p196) target = $region32
      $region31: #{_lambda_.3} parent=11 // pred_region
        _
      $region32: #{_lambda_.3} parent=11 // pred_fallthru
        _
    $region12: #{_lambda_.3} parent=5 // pred_fallthru
      _
    %p199 = scmp.lt.s32.totalorder %s12, 2
    // Predicated region
    $region33: #{_lambda_.3} parent=5 // pred_check
      %p200 = pneg %p199
    $region34: #{_lambda_.3} parent=5 // pred_check_branch
      %202 = sbr.rel (%p200) target = $region36
    $region35: #{_lambda_.3} parent=5 // pred_region
      // Predicated region
      $region37: #{_lambda_.3} parent=35 // pred_check
        %p203 = pneg %p32
      $region38: #{_lambda_.3} parent=35 // pred_check_branch
        %205 = sbr.rel (%p203) target = $region40
      $region39: #{_lambda_.3} parent=35 // pred_region
        %p206 = scmp.lt.s32.totalorder %s12, 1
        %s207 = scalar_select %p206, %s12, 1
        %s208 = smul.addr %s207, 2
        %s209 = smul.addr %s208, 8
        %s210 = scalar_lea.vmem %s0, %s209
      $region40: #{_lambda_.3} parent=35 // pred_fallthru
        _
    $region36: #{_lambda_.3} parent=5 // pred_fallthru
      _
    %p211 = scmp.le.s32.totalorder 1, %s12
    %p212 = scmp.lt.s32.totalorder %s12, 3
    %p213 = pnand %p211, %p212
    %p214 = pneg %p213
    // Predicated region
    $region41: #{_lambda_.3} parent=5 // pred_check
      _
    $region42: #{_lambda_.3} parent=5 // pred_check_branch
      %216 = sbr.rel (%p213) target = $region44
    $region43: #{_lambda_.3} parent=5 // pred_region
      %s217 = ssub.s32 %s12, 1
      %p218 = scmp.lt.s32.totalorder %s17, 1
      %s219 = scalar_select %p218, %s17, 1
      %s220 = smul.addr %s219, 2
      %s221 = smul.addr %s220, 8
      %s222 = scalar_lea.vmem %s0, %s221
      %p223 = pneg %p38
      %p224 = pneg %p35
      %p225 = pneg %p59
      %p226 = pneg %p56
      %p227 = pneg %p80
      %p228 = pneg %p77
      %p229 = pneg %p101
      %p230 = pneg %p98
      %p231 = pneg %p122
      %p232 = pneg %p119
      %p233 = pneg %p143
      %p234 = pneg %p140
      %p235 = pneg %p169
      %p236 = pneg %p166
      %p237 = scmp.lt.s32.totalorder %s17, 1
      %s238 = scalar_select %p237, %s17, 1
      %s239 = smul.addr %s238, 2
      %s240 = smul.addr %s239, 8
      %s241 = scalar_lea.vmem %s6, %s240
      %p242 = scmp.lt.s32.totalorder %s17, 1
      %s243 = scalar_select %p242, %s17, 1
      %s244 = smul.addr %s243, 2
      %s245 = smul.addr %s244, 8
      %s246 = scalar_lea.vmem %s0, %s245
      %p247 = scmp.lt.s32.totalorder %s17, 1
      %s248 = scalar_select %p247, %s17, 1
      %s249 = smul.addr %s248, 2
      %s250 = smul.addr %s249, 8
      %s251 = scalar_lea.vmem %s6, %s250
      %255 = vst [vmem:[#allocation2] sm:$0xf] 0
      %256 = vst [vmem:[#allocation2 + $0xc] sm:$0xf] 0
      %257 = vst [vmem:[#allocation3] sm:$0xf] 0
      %258 = vst [vmem:[#allocation3 + $0xc] sm:$0xf] 0
      %v259 = vld [vmem:[%s246] sm:$0xff]
      %v260 = vld [vmem:[%s246 + $0x8] sm:$0xff]
      %v261 = vld [vmem:[%s1] sm:$0xff]
      %263 = vset.pattern.permute.xlu0 0
      %264 = vperm.xlu0 %263, %v261
      %v265 = vpop.permute.xlu0 %264
      %v267 = vmul.f32 %v259, %v265
      %v268 = vmul.f32 %v260, %v265
      %v269 = vld [vmem:[%s2] sm:$0xff]
      %271 = vset.pattern.permute.xlu0 0
      %272 = vperm.xlu0 %271, %v269
      %v273 = vpop.permute.xlu0 %272
      %v275 = vadd.f32 %v267, %v273
      %v276 = vadd.f32 %v268, %v273
      %v277 = vmax.f32 %v275, 0.0
      %v278 = vmax.f32 %v276, 0.0
      %v279 = vpack.c.bf16 %v277, %v277
      %v280 = vpack.c.bf16 %v278, %v278
      %v283 = vunpack.c.l.b16 %v279
      %v284 = vunpack.c.l.b16 %v280
      %v285 = vpack.c.b16 %v284, %v283
      %287 = vst [vmem:[#allocation2 + $0x4] sm:$0xff] %v285
      %v288 = vlaneseq
      %v289 = vand.u32 %v288, 127
      %v290 = vadd.s32 %v289, 128
      %vm291 = vcmp.lt.s32.totalorder %v289, 0
      %v292 = vsub.s32 0, %v289
      %v293 = vsel %vm291, %v292, %v289
      %v294 = vshrl.u32 %v293, 4
      %v295 = vand.u32 %v293, 15
      %v296 = vsub.s32 0, %v295
      %v297 = vsel %vm291, %v296, %v295
      %vm298 = vcmp.lt.s32.totalorder %v290, 0
      %v299 = vsub.s32 0, %v290
      %v300 = vsel %vm298, %v299, %v290
      %v301 = vshrl.u32 %v300, 4
      %v302 = vand.u32 %v300, 15
      %v303 = vsub.s32 0, %v302
      %v304 = vsel %vm298, %v303, %v302
      %vm305 = vcmp.ne.s32.totalorder %v297, 0
      %vm306 = vcmp.ne.s32.totalorder %v304, 0
      %vm307 = vcmp.lt.s32.totalorder %v297, 0
      %vm308 = vcmp.lt.s32.totalorder %v304, 0
      %vm309 = vmand %vm307, %vm305
      %vm310 = vmand %vm308, %vm306
      %v311 = vadd.s32 %v297, 16
      %v312 = vadd.s32 %v304, 16
      %v313 = vsel %vm309, %v311, %v297
      %v314 = vsel %vm310, %v312, %v304
      %vm315 = vcmp.gt.s32.totalorder %v313, 0
      %vm316 = vcmp.gt.s32.totalorder %v314, 0
      %vm317 = vcmp.lt.s32.totalorder %v313, 15
      %vm318 = vcmp.lt.s32.totalorder %v314, 15
      %v319 = vld [vmem:[#allocation2] sm:$0xff]
      %v320 = vld [vmem:[#allocation2 + $0x8] sm:$0xf]
      %v321 = vsel %vm315, 1, 0
      %v322 = vsel %vm316, 1, 0
      %vm323 = vcmp.eq.s32.totalorder %v321, 1
      %vm324 = vcmp.eq.s32.totalorder %v322, 1
      %vm325 = vmpackc.low %vm324, %vm323
      %v326 = vsel %vm325, 65537, 0
      %327 = vrot.lane.b32.xlu0 %v326, 111
      %v328 = vpop.permute.xlu0 %327
      %v329 = vrot.slane %v328, 4
      %vm330 = vcmask 908288
      %v331 = vsel %vm330, %v329, %v328
      %vm332 = vcmp.ne.s16.totalorder %v331, 0
      %vm333 = vcmp.ne.s16.totalorder %v329, 0
      %v334 = vsel %vm332, %v319, 0
      %v335 = vsel %vm333, %v320, 0
      %338 = vrot.lane.b32.xlu0 %v334, 17
      %v339 = vpop.permute.xlu0 %338
      %340 = vrot.lane.b32.xlu0 %v335, 17
      %v341 = vpop.permute.xlu0 %340
      %v342 = vrot.slane %v339, 4
      %v343 = vrot.slane %v341, 4
      %vm344 = vcmask 1043456
      %v345 = vsel %vm344, %v342, %v343
      %vm346 = vcmask 138240
      %v347 = vsel %vm346, %v339, %v345
      %349 = vst [vmem:[#allocation4] sm:$0xff] %v347
      %v350 = vld [vmem:[#allocation2] sm:$0xff]
      %v351 = vld [vmem:[#allocation2 + $0x8] sm:$0xf]
      %354 = vrot.lane.b32.xlu0 %v350, 16
      %v355 = vpop.permute.xlu0 %354
      %356 = vrot.lane.b32.xlu0 %v351, 16
      %v357 = vpop.permute.xlu0 %356
      %v358 = vrot.slane %v355, 4
      %v359 = vrot.slane %v357, 4
      %v360 = vsel %vm344, %v358, %v359
      %vm361 = vcmask 130048
      %v362 = vsel %vm361, %v355, %v360
      %364 = vst [vmem:[#allocation4 + $0x8] sm:$0xff] %v362
      %v365 = vld [vmem:[#allocation2] sm:$0xff]
      %v366 = vld [vmem:[#allocation2 + $0x8] sm:$0xf]
      %v367 = vsel %vm317, 1, 0
      %v368 = vsel %vm318, 1, 0
      %vm369 = vcmp.eq.s32.totalorder %v367, 1
      %vm370 = vcmp.eq.s32.totalorder %v368, 1
      %vm371 = vmpackc.low %vm370, %vm369
      %v372 = vsel %vm371, 65537, 0
      %373 = vrot.lane.b32.xlu0 %v372, 113
      %v374 = vpop.permute.xlu0 %373
      %v375 = vrot.slane %v374, 4
      %vm376 = vcmask 924672
      %v377 = vsel %vm376, %v375, %v374
      %vm378 = vcmp.ne.s16.totalorder %v377, 0
      %vm379 = vcmp.ne.s16.totalorder %v375, 0
      %v380 = vsel %vm378, %v365, 0
      %v381 = vsel %vm379, %v366, 0
      %384 = vrot.lane.b32.xlu0 %v380, 15
      %v385 = vpop.permute.xlu0 %384
      %386 = vrot.lane.b32.xlu0 %v381, 15
      %v387 = vpop.permute.xlu0 %386
      %v388 = vrot.slane %v385, 4
      %v389 = vrot.slane %v387, 4
      %v390 = vsel %vm344, %v388, %v389
      %vm391 = vcmask 121856
      %v392 = vsel %vm391, %v385, %v390
      %394 = vst [vmem:[#allocation4 + $0x10] sm:$0xff] %v392
      %v395 = vld [vmem:[#allocation2] sm:$0xff]
      %v396 = vld [vmem:[#allocation2 + $0x8] sm:$0xf]
      %397 = vrot.lane.b32.xlu0 %v326, 127
      %v398 = vpop.permute.xlu0 %397
      %v399 = vrot.slane %v398, 4
      %vm400 = vcmask 1039360
      %v401 = vsel %vm400, %v399, %v398
      %vm402 = vcmp.ne.s16.totalorder %v401, 0
      %vm403 = vcmp.ne.s16.totalorder %v399, 0
      %v404 = vsel %vm402, %v395, 0
      %v405 = vsel %vm403, %v396, 0
      %408 = vrot.lane.b32.xlu0 %v404, 1
      %v409 = vpop.permute.xlu0 %408
      %410 = vrot.lane.b32.xlu0 %v405, 1
      %v411 = vpop.permute.xlu0 %410
      %v412 = vrot.slane %v409, 4
      %v413 = vrot.slane %v411, 4
      %v414 = vsel %vm344, %v412, %v413
      %vm415 = vcmask 7168
      %v416 = vsel %vm415, %v409, %v414
      %418 = vst [vmem:[#allocation4 + $0x18] sm:$0xff] %v416
      %v419 = vld [vmem:[#allocation2 + $0x4] sm:$0xff]
      %420 = vst [vmem:[#allocation4 + $0x20] sm:$0xff] %v419
      %v421 = vld [vmem:[#allocation2 + $0x4] sm:$0xff]
      %v422 = vld [vmem:[#allocation2 + $0xc] sm:$0xf]
      %423 = vrot.lane.b32.xlu0 %v372, 1
      %v424 = vpop.permute.xlu0 %423
      %v425 = vrot.slane %v424, 4
      %v426 = vsel %vm415, %v425, %v424
      %vm427 = vcmp.ne.s16.totalorder %v426, 0
      %vm428 = vcmp.ne.s16.totalorder %v425, 0
      %v429 = vsel %vm427, %v421, 0
      %v430 = vsel %vm428, %v422, 0
      %433 = vrot.lane.b32.xlu0 %v429, 127
      %v434 = vpop.permute.xlu0 %433
      %435 = vrot.lane.b32.xlu0 %v430, 127
      %v436 = vpop.permute.xlu0 %435
      %v437 = vrot.slane %v434, 4
      %v438 = vrot.slane %v436, 4
      %v439 = vsel %vm344, %v437, %v438
      %v440 = vsel %vm400, %v434, %v439
      %442 = vst [vmem:[#allocation4 + $0x28] sm:$0xff] %v440
      %v443 = vld [vmem:[#allocation2 + $0x4] sm:$0xff]
      %v444 = vld [vmem:[#allocation2 + $0xc] sm:$0xf]
      %445 = vrot.lane.b32.xlu0 %v326, 15
      %v446 = vpop.permute.xlu0 %445
      %v447 = vrot.slane %v446, 4
      %v448 = vsel %vm391, %v447, %v446
      %vm449 = vcmp.ne.s16.totalorder %v448, 0
      %vm450 = vcmp.ne.s16.totalorder %v447, 0
      %v451 = vsel %vm449, %v443, 0
      %v452 = vsel %vm450, %v444, 0
      %455 = vrot.lane.b32.xlu0 %v451, 113
      %v456 = vpop.permute.xlu0 %455
      %457 = vrot.lane.b32.xlu0 %v452, 113
      %v458 = vpop.permute.xlu0 %457
      %v459 = vrot.slane %v456, 4
      %v460 = vrot.slane %v458, 4
      %v461 = vsel %vm344, %v459, %v460
      %v462 = vsel %vm376, %v456, %v461
      %464 = vst [vmem:[#allocation4 + $0x30] sm:$0xff] %v462
      %v465 = vld [vmem:[#allocation2 + $0x4] sm:$0xff]
      %v466 = vld [vmem:[#allocation2 + $0xc] sm:$0xf]
      %469 = vrot.lane.b32.xlu0 %v465, 112
      %v470 = vpop.permute.xlu0 %469
      %471 = vrot.lane.b32.xlu0 %v466, 112
      %v472 = vpop.permute.xlu0 %471
      %v473 = vrot.slane %v470, 4
      %v474 = vrot.slane %v472, 4
      %v475 = vsel %vm344, %v473, %v474
      %vm476 = vcmask 916480
      %v477 = vsel %vm476, %v470, %v475
      %479 = vst [vmem:[#allocation4 + $0x38] sm:$0xff] %v477
      %v480 = vld [vmem:[#allocation2 + $0x4] sm:$0xff]
      %v481 = vld [vmem:[#allocation2 + $0xc] sm:$0xf]
      %482 = vrot.lane.b32.xlu0 %v372, 17
      %v483 = vpop.permute.xlu0 %482
      %v484 = vrot.slane %v483, 4
      %v485 = vsel %vm346, %v484, %v483
      %vm486 = vcmp.ne.s16.totalorder %v485, 0
      %vm487 = vcmp.ne.s16.totalorder %v484, 0
      %v488 = vsel %vm486, %v480, 0
      %v489 = vsel %vm487, %v481, 0
      %492 = vrot.lane.b32.xlu0 %v488, 111
      %v493 = vpop.permute.xlu0 %492
      %494 = vrot.lane.b32.xlu0 %v489, 111
      %v495 = vpop.permute.xlu0 %494
      %v496 = vrot.slane %v493, 4
      %v497 = vrot.slane %v495, 4
      %v498 = vsel %vm344, %v496, %v497
      %v499 = vsel %vm330, %v493, %v498
      %501 = vst [vmem:[#allocation4 + $0x40] sm:$0xff] %v499
      %v502 = vld [vmem:[%s4] sm:$0xf]
      %v503 = vld [vmem:[#allocation4] sm:$0xff]
      %v504 = vld [vmem:[#allocation4 + $0x8] sm:$0xff]
      %v505 = vld [vmem:[#allocation4 + $0x10] sm:$0xff]
      %v506 = vld [vmem:[#allocation4 + $0x18] sm:$0xff]
      %v507 = vld [vmem:[#allocation4 + $0x20] sm:$0xff]
      %v508 = vld [vmem:[#allocation4 + $0x28] sm:$0xff]
      %v509 = vld [vmem:[#allocation4 + $0x30] sm:$0xff]
      %v510 = vld [vmem:[#allocation4 + $0x38] sm:$0xff]
      %v511 = vld [vmem:[#allocation4 + $0x40] sm:$0xff]
      %v512 = vld [vmem:[%s3] sm:$0xff]
      %514 = vset.pattern.permute.xlu0 0
      %515 = vperm.xlu0 %514, %v512
      %v516 = vpop.permute.xlu0 %515
      %v527 = vunpack.c.l.b16 %v503
      %v528 = vunpack.c.h.b16 %v503
      %v529 = vunpack.c.l.b16 %v504
      %v530 = vunpack.c.h.b16 %v504
      %v531 = vunpack.c.l.b16 %v505
      %v532 = vunpack.c.h.b16 %v505
      %v533 = vunpack.c.l.b16 %v506
      %v534 = vunpack.c.h.b16 %v506
      %v535 = vunpack.c.l.b16 %v507
      %v536 = vunpack.c.h.b16 %v507
      %v537 = vunpack.c.l.b16 %v508
      %v538 = vunpack.c.h.b16 %v508
      %v539 = vunpack.c.l.b16 %v509
      %v540 = vunpack.c.h.b16 %v509
      %v541 = vunpack.c.l.b16 %v510
      %v542 = vunpack.c.h.b16 %v510
      %v543 = vunpack.c.l.b16 %v511
      %v544 = vunpack.c.h.b16 %v511
      %v545 = vpack.c.b16 %v529, %v527
      %v546 = vpack.c.b16 %v530, %v528
      %v547 = vpack.c.b16 %v533, %v531
      %v548 = vpack.c.b16 %v534, %v532
      %v549 = vpack.c.b16 %v537, %v535
      %v550 = vpack.c.b16 %v538, %v536
      %v551 = vpack.c.b16 %v541, %v539
      %v552 = vpack.c.b16 %v542, %v540
      %v553 = vpack.c.b16 %v543, %v543
      %v554 = vpack.c.b16 %v544, %v544
      %vm563 = vcmask 588800
      %v565 = vsel %vm563, %v502, 0
      %vm567 = vcmask 1043456
      %v569 = vsel %vm567, %v553, 0
      %v572 = vsel %vm567, %v554, 0
      %574 = vmatprep.subr.bf16.mxu0 %v546
      %575 = vmatpush1.bf16.msra.mxu0 %v545
      %576 = vmatprep.subr.bf16.mxu0 %v548
      %577 = vmatpush1.bf16.msra.mxu0 %v547
      %578 = vmatprep.subr.bf16.mxu0 %v550
      %579 = vmatpush1.bf16.msra.mxu0 %v549
      %580 = vmatprep.subr.bf16.mxu0 %v552
      %581 = vmatpush1.bf16.msra.mxu0 %v551
      %582 = vmatprep.subr.bf16.mxu0 %v572
      %583 = vmatpush1.bf16.msra.mxu0 %v569
      %584 = vmatprep.subr.bf16.mxu0 0
      %585 = vmatpush1.bf16.msra.mxu0 0
      %586 = vmatprep.subr.bf16.mxu0 0
      %587 = vmatpush1.bf16.msra.mxu0 0
      %588 = vmatprep.subr.bf16.mxu0 0
      %589 = vmatpush1.bf16.msra.mxu0 0
      %590 = vmatprep.subr.bf16.mxu0 0
      %591 = vmatpush1.bf16.msra.mxu0 0
      %592 = vmatprep.subr.bf16.mxu0 0
      %593 = vmatpush1.bf16.msra.mxu0 0
      %594 = vmatprep.subr.bf16.mxu0 0
      %595 = vmatpush1.bf16.msra.mxu0 0
      %596 = vmatprep.subr.bf16.mxu0 0
      %597 = vmatpush1.bf16.msra.mxu0 0
      %598 = vmatprep.subr.bf16.mxu0 0
      %599 = vmatpush1.bf16.msra.mxu0 0
      %600 = vmatprep.subr.bf16.mxu0 0
      %601 = vmatpush1.bf16.msra.mxu0 0
      %602 = vmatprep.subr.bf16.mxu0 0
      %603 = vmatpush1.bf16.msra.mxu0 0
      %604 = vmatprep.subr.bf16.mxu0 0
      %605 = vmatpush1.bf16.msra.mxu0 0
      %606 = vmatprep.mubr.bf16.mxu0 0
      %607 = vmatmul.mubr.bf16.gmra.mrb[0].mxu0 %v565
      %v608 = vpop.f32.mrb[0].mxu0
      %v609 = vadd.f32 %v516, %v608
      %v610 = vpop.f32.mrb[0].mxu0
      %v611 = vadd.f32 %v516, %v610
      %v612 = vpop.f32.mrb[0].mxu0
      %v613 = vpop.f32.mrb[0].mxu0
      %614 = vdwg.mxu0
      %v615 = vmax.f32 %v609, 0.0
      %v616 = vmax.f32 %v611, 0.0
      %v617 = vpack.c.bf16 %v615, %v615
      %v618 = vpack.c.bf16 %v616, %v616
      %v621 = vunpack.c.l.b16 %v617
      %v622 = vunpack.c.l.b16 %v618
      %v623 = vpack.c.b16 %v622, %v621
      %625 = vst [vmem:[#allocation3 + $0x4] sm:$0xff] %v623
      %v626 = vld [vmem:[%s246] sm:$0xff]
      %v627 = vld [vmem:[%s246 + $0x8] sm:$0xff]
      %v628 = vld [vmem:[#allocation3] sm:$0xff]
      %v629 = vld [vmem:[#allocation3 + $0x8] sm:$0xf]
      %v630 = vsel %vm332, %v628, 0
      %v631 = vsel %vm333, %v629, 0
      %634 = vrot.lane.b32.xlu0 %v630, 17
      %v635 = vpop.permute.xlu0 %634
      %636 = vrot.lane.b32.xlu0 %v631, 17
      %v637 = vpop.permute.xlu0 %636
      %v638 = vrot.slane %v635, 4
      %v639 = vrot.slane %v637, 4
      %v640 = vsel %vm344, %v638, %v639
      %v641 = vsel %vm346, %v635, %v640
      %643 = vst [vmem:[#allocation4] sm:$0xff] %v641
      %v644 = vld [vmem:[#allocation3] sm:$0xff]
      %v645 = vld [vmem:[#allocation3 + $0x8] sm:$0xf]
      %648 = vrot.lane.b32.xlu0 %v644, 16
      %v649 = vpop.permute.xlu0 %648
      %650 = vrot.lane.b32.xlu0 %v645, 16
      %v651 = vpop.permute.xlu0 %650
      %v652 = vrot.slane %v649, 4
      %v653 = vrot.slane %v651, 4
      %v654 = vsel %vm344, %v652, %v653
      %v655 = vsel %vm361, %v649, %v654
      %657 = vst [vmem:[#allocation4 + $0x8] sm:$0xff] %v655
      %v658 = vld [vmem:[#allocation3] sm:$0xff]
      %v659 = vld [vmem:[#allocation3 + $0x8] sm:$0xf]
      %v660 = vsel %vm378, %v658, 0
      %v661 = vsel %vm379, %v659, 0
      %664 = vrot.lane.b32.xlu0 %v660, 15
      %v665 = vpop.permute.xlu0 %664
      %666 = vrot.lane.b32.xlu0 %v661, 15
      %v667 = vpop.permute.xlu0 %666
      %v668 = vrot.slane %v665, 4
      %v669 = vrot.slane %v667, 4
      %v670 = vsel %vm344, %v668, %v669
      %v671 = vsel %vm391, %v665, %v670
      %673 = vst [vmem:[#allocation4 + $0x10] sm:$0xff] %v671
      %v674 = vld [vmem:[#allocation3] sm:$0xff]
      %v675 = vld [vmem:[#allocation3 + $0x8] sm:$0xf]
      %v676 = vsel %vm402, %v674, 0
      %v677 = vsel %vm403, %v675, 0
      %680 = vrot.lane.b32.xlu0 %v676, 1
      %v681 = vpop.permute.xlu0 %680
      %682 = vrot.lane.b32.xlu0 %v677, 1
      %v683 = vpop.permute.xlu0 %682
      %v684 = vrot.slane %v681, 4
      %v685 = vrot.slane %v683, 4
      %v686 = vsel %vm344, %v684, %v685
      %v687 = vsel %vm415, %v681, %v686
      %689 = vst [vmem:[#allocation4 + $0x18] sm:$0xff] %v687
      %v690 = vld [vmem:[#allocation3 + $0x4] sm:$0xff]
      %691 = vst [vmem:[#allocation4 + $0x20] sm:$0xff] %v690
      %v692 = vld [vmem:[#allocation3 + $0x4] sm:$0xff]
      %v693 = vld [vmem:[#allocation3 + $0xc] sm:$0xf]
      %v694 = vsel %vm427, %v692, 0
      %v695 = vsel %vm428, %v693, 0
      %698 = vrot.lane.b32.xlu0 %v694, 127
      %v699 = vpop.permute.xlu0 %698
      %700 = vrot.lane.b32.xlu0 %v695, 127
      %v701 = vpop.permute.xlu0 %700
      %v702 = vrot.slane %v699, 4
      %v703 = vrot.slane %v701, 4
      %v704 = vsel %vm344, %v702, %v703
      %v705 = vsel %vm400, %v699, %v704
      %707 = vst [vmem:[#allocation4 + $0x28] sm:$0xff] %v705
      %v708 = vld [vmem:[#allocation3 + $0x4] sm:$0xff]
      %v709 = vld [vmem:[#allocation3 + $0xc] sm:$0xf]
      %v710 = vsel %vm449, %v708, 0
      %v711 = vsel %vm450, %v709, 0
      %714 = vrot.lane.b32.xlu0 %v710, 113
      %v715 = vpop.permute.xlu0 %714
      %716 = vrot.lane.b32.xlu0 %v711, 113
      %v717 = vpop.permute.xlu0 %716
      %v718 = vrot.slane %v715, 4
      %v719 = vrot.slane %v717, 4
      %v720 = vsel %vm344, %v718, %v719
      %v721 = vsel %vm376, %v715, %v720
      %723 = vst [vmem:[#allocation4 + $0x30] sm:$0xff] %v721
      %v724 = vld [vmem:[#allocation3 + $0x4] sm:$0xff]
      %v725 = vld [vmem:[#allocation3 + $0xc] sm:$0xf]
      %728 = vrot.lane.b32.xlu0 %v724, 112
      %v729 = vpop.permute.xlu0 %728
      %730 = vrot.lane.b32.xlu0 %v725, 112
      %v731 = vpop.permute.xlu0 %730
      %v732 = vrot.slane %v729, 4
      %v733 = vrot.slane %v731, 4
      %v734 = vsel %vm344, %v732, %v733
      %v735 = vsel %vm476, %v729, %v734
      %737 = vst [vmem:[#allocation4 + $0x38] sm:$0xff] %v735
      %v738 = vld [vmem:[#allocation3 + $0x4] sm:$0xff]
      %v739 = vld [vmem:[#allocation3 + $0xc] sm:$0xf]
      %v740 = vsel %vm486, %v738, 0
      %v741 = vsel %vm487, %v739, 0
      %744 = vrot.lane.b32.xlu0 %v740, 111
      %v745 = vpop.permute.xlu0 %744
      %746 = vrot.lane.b32.xlu0 %v741, 111
      %v747 = vpop.permute.xlu0 %746
      %v748 = vrot.slane %v745, 4
      %v749 = vrot.slane %v747, 4
      %v750 = vsel %vm344, %v748, %v749
      %v751 = vsel %vm330, %v745, %v750
      %753 = vst [vmem:[#allocation4 + $0x40] sm:$0xff] %v751
      %v754 = vld [vmem:[%s5] sm:$0xf]
      %v755 = vld [vmem:[#allocation4] sm:$0xff]
      %v756 = vld [vmem:[#allocation4 + $0x8] sm:$0xff]
      %v757 = vld [vmem:[#allocation4 + $0x10] sm:$0xff]
      %v758 = vld [vmem:[#allocation4 + $0x18] sm:$0xff]
      %v759 = vld [vmem:[#allocation4 + $0x20] sm:$0xff]
      %v760 = vld [vmem:[#allocation4 + $0x28] sm:$0xff]
      %v761 = vld [vmem:[#allocation4 + $0x30] sm:$0xff]
      %v762 = vld [vmem:[#allocation4 + $0x38] sm:$0xff]
      %v763 = vld [vmem:[#allocation4 + $0x40] sm:$0xff]
      %v773 = vunpack.c.l.b16 %v755
      %v774 = vunpack.c.h.b16 %v755
      %v775 = vunpack.c.l.b16 %v756
      %v776 = vunpack.c.h.b16 %v756
      %v777 = vunpack.c.l.b16 %v757
      %v778 = vunpack.c.h.b16 %v757
      %v779 = vunpack.c.l.b16 %v758
      %v780 = vunpack.c.h.b16 %v758
      %v781 = vunpack.c.l.b16 %v759
      %v782 = vunpack.c.h.b16 %v759
      %v783 = vunpack.c.l.b16 %v760
      %v784 = vunpack.c.h.b16 %v760
      %v785 = vunpack.c.l.b16 %v761
      %v786 = vunpack.c.h.b16 %v761
      %v787 = vunpack.c.l.b16 %v762
      %v788 = vunpack.c.h.b16 %v762
      %v789 = vunpack.c.l.b16 %v763
      %v790 = vunpack.c.h.b16 %v763
      %v791 = vpack.c.b16 %v775, %v773
      %v792 = vpack.c.b16 %v776, %v774
      %v793 = vpack.c.b16 %v779, %v777
      %v794 = vpack.c.b16 %v780, %v778
      %v795 = vpack.c.b16 %v783, %v781
      %v796 = vpack.c.b16 %v784, %v782
      %v797 = vpack.c.b16 %v787, %v785
      %v798 = vpack.c.b16 %v788, %v786
      %v799 = vpack.c.b16 %v789, %v789
      %v800 = vpack.c.b16 %v790, %v790
      %v810 = vsel %vm563, %v754, 0
      %v813 = vsel %vm567, %v799, 0
      %v816 = vsel %vm567, %v800, 0
      %818 = vmatprep.subr.bf16.mxu0 %v792
      %819 = vmatpush1.bf16.msra.mxu0 %v791
      %820 = vmatprep.subr.bf16.mxu0 %v794
      %821 = vmatpush1.bf16.msra.mxu0 %v793
      %822 = vmatprep.subr.bf16.mxu0 %v796
      %823 = vmatpush1.bf16.msra.mxu0 %v795
      %824 = vmatprep.subr.bf16.mxu0 %v798
      %825 = vmatpush1.bf16.msra.mxu0 %v797
      %826 = vmatprep.subr.bf16.mxu0 %v816
      %827 = vmatpush1.bf16.msra.mxu0 %v813
      %828 = vmatprep.subr.bf16.mxu0 0
      %829 = vmatpush1.bf16.msra.mxu0 0
      %830 = vmatprep.subr.bf16.mxu0 0
      %831 = vmatpush1.bf16.msra.mxu0 0
      %832 = vmatprep.subr.bf16.mxu0 0
      %833 = vmatpush1.bf16.msra.mxu0 0
      %834 = vmatprep.subr.bf16.mxu0 0
      %835 = vmatpush1.bf16.msra.mxu0 0
      %836 = vmatprep.subr.bf16.mxu0 0
      %837 = vmatpush1.bf16.msra.mxu0 0
      %838 = vmatprep.subr.bf16.mxu0 0
      %839 = vmatpush1.bf16.msra.mxu0 0
      %840 = vmatprep.subr.bf16.mxu0 0
      %841 = vmatpush1.bf16.msra.mxu0 0
      %842 = vmatprep.subr.bf16.mxu0 0
      %843 = vmatpush1.bf16.msra.mxu0 0
      %844 = vmatprep.subr.bf16.mxu0 0
      %845 = vmatpush1.bf16.msra.mxu0 0
      %846 = vmatprep.subr.bf16.mxu0 0
      %847 = vmatpush1.bf16.msra.mxu0 0
      %848 = vmatprep.subr.bf16.mxu0 0
      %849 = vmatpush1.bf16.msra.mxu0 0
      %850 = vmatprep.mubr.bf16.mxu0 0
      %851 = vmatmul.mubr.bf16.gmra.mrb[0].mxu0 %v810
      %v852 = vpop.f32.mrb[0].mxu0
      %v853 = vadd.f32 %v626, %v852
      %v854 = vpop.f32.mrb[0].mxu0
      %v855 = vadd.f32 %v627, %v854
      %v856 = vpop.f32.mrb[0].mxu0
      %v857 = vpop.f32.mrb[0].mxu0
      %858 = vdwg.mxu0
      %859 = vst [vmem:[%s251] sm:$0xff] %v853
      %860 = vst [vmem:[%s251 + $0x8] sm:$0xff] %v855
      %p861 = scmp.lt.s32.totalorder %s17, 1
      %s862 = scalar_select %p861, %s17, 1
      %s863 = smul.addr %s862, 2
      %s864 = smul.addr %s863, 8
      %s865 = scalar_lea.vmem %s6, %s864
      // Predicated region
      $region45: #{_lambda_.3} parent=43 // pred_check
        %p866 = pneg %p166
      $region46: #{_lambda_.3} parent=43 // pred_check_branch
        %868 = sbr.rel (%p866) target = $region48
      $region47: #{_lambda_.3} parent=43 // pred_region
        _
      $region48: #{_lambda_.3} parent=43 // pred_fallthru
        _
    $region44: #{_lambda_.3} parent=5 // pred_fallthru
      _
    %p869 = scmp.le.s32.totalorder 2, %s12
    // Predicated region
    $region49: #{_lambda_.3} parent=5 // pred_check
      %p870 = pneg %p869
    $region50: #{_lambda_.3} parent=5 // pred_check_branch
      %872 = sbr.rel (%p870) target = $region52
    $region51: #{_lambda_.3} parent=5 // pred_region
      %s873 = ssub.s32 %s12, 2
      // Predicated region
      $region53: #{_lambda_.3} parent=51 // pred_check
        %p874 = pneg %p172
      $region54: #{_lambda_.3} parent=51 // pred_check_branch
        %876 = sbr.rel (%p874) target = $region56
      $region55: #{_lambda_.3} parent=51 // pred_region
        %p877 = scmp.lt.s32.totalorder %s18, 1
        %s878 = scalar_select %p877, %s18, 1
        %s879 = smul.addr %s878, 2
        %s880 = smul.addr %s879, 8
        %s881 = scalar_lea.vmem %s6, %s880
      $region56: #{_lambda_.3} parent=51 // pred_fallthru
        _
    $region52: #{_lambda_.3} parent=5 // pred_fallthru
      _
  $region6: #{_lambda_.3} parent=0 // loop_footer
    %s16 = sadd.s32 1, %s12
  $region7: #{_lambda_.3} parent=0 // loop_footer_branch
    %11 = sbr.rel target = $region3
  $region8: #{_lambda_.3} parent=0 // loop_exit
    _

</llo_original>
